<compile_context>
chip_gen: v7x
topology: tpu7x:2x2x1
jax: 0.10.0
libtpu: 0.0.40
codegen_flags: <defaults>
</compile_context>

<pallas_src>
import math

import jax
import jax.numpy as jnp
from jax.experimental import pallas as pl
from jax.experimental.pallas import tpu as pltpu

# ----------------------------- "config" -------------------------------------
HIDDEN = 64          # config.hidden_size
N_HEADS = 4          # config.num_attention_heads
N_KV_HEADS = 2       # config.num_key_value_heads (GQA)
HEAD_DIM = HIDDEN // N_HEADS   # 16
N_REP = N_HEADS // N_KV_HEADS
INTERMEDIATE = 128   # config.intermediate_size
RMS_EPS = 1e-6       # config.rms_norm_eps
ROPE_THETA = 10000.0
MASK_NEG = -1e9      # additive-mask fill value (cf. torch.finfo(dtype).min)

BATCH = 2
SEQ = 8


# ----------------------------- fused kernel ----------------------------------
def _decoder_layer_kernel(x_ref, mask_ref, cos_ref, sin_ref, ln1_ref,
                          wq_ref, wqr_ref, wk_ref, wkr_ref, wv_ref, wo_ref,
                          ln2_ref, wg_ref, wu_ref, wd_ref, o_ref):
    """One token-slab per invocation.

    x_ref    : (T, H)   hidden states (T = SEQ on the batch-grid path,
                         T = BATCH*SEQ on the batch-folded path)
    mask_ref : (T, T)   additive eager attention mask
    cos/sin  : (T, HEAD_DIM) rotary tables (rows aligned with x rows)
    wq/wqr   : (N_HEADS,    H, D) per-head Q / rotate-half-folded Q weights,
               bf16; the 1/sqrt(D) softmax scale is already folded in.
    wk/wkr/wv: (N_KV_HEADS, H, D) per-KV-head weights, bf16
    wo       : (N_HEADS, D, H)    per-head output-projection blocks, bf16
    wg/wu/wd : SwiGLU MLP weights, bf16
    ln1/ln2  : (1, H) f32 RMSNorm weights
    """
    x = x_ref[...].astype(jnp.float32)                         # (T, H) residual
    t = x.shape[0]

    # ---- input RMSNorm (f32 statistics) ----
    var = jnp.mean(x * x, axis=-1, keepdims=True)
    hn = (x * jax.lax.rsqrt(var + RMS_EPS)) * ln1_ref[...]
    hn_b = hn.astype(jnp.bfloat16)                             # bf16 MXU input

    cos = cos_ref[...]                                         # (T, D) f32
    sin = sin_ref[...]
    mask = mask_ref[...]                                       # (T, T) additive

    # ---- self-attention: heads unrolled; no slices / concats / transposes ----
    attn_out = jnp.zeros((t, HIDDEN), jnp.float32)
    for kvh in range(N_KV_HEADS):
        # K/V for this KV head are computed once and shared by its GQA group.
        kh = jnp.dot(hn_b, wk_ref[kvh], preferred_element_type=jnp.float32)
        khr = jnp.dot(hn_b, wkr_ref[kvh], preferred_element_type=jnp.float32)
        k_ro = (kh * cos + khr * sin).astype(jnp.bfloat16)      # RoPE = 2 FMAs
        vh = jnp.dot(hn_b, wv_ref[kvh],
                     preferred_element_type=jnp.float32).astype(jnp.bfloat16)
        for r in range(N_REP):
            h = kvh * N_REP + r                                 # HF repeat_kv order
            qh = jnp.dot(hn_b, wq_ref[h], preferred_element_type=jnp.float32)
            qhr = jnp.dot(hn_b, wqr_ref[h], preferred_element_type=jnp.float32)
            q_ro = (qh * cos + qhr * sin).astype(jnp.bfloat16)  # scale pre-folded
            # scores = q . k^T without materializing the transpose
            # (dot_general contracting dim1 x dim1), bf16 in / f32 accumulate.
            s = jax.lax.dot_general(
                q_ro, k_ro, (((1,), (1,)), ((), ())),
                preferred_element_type=jnp.float32) + mask
            m = jnp.max(s, axis=-1, keepdims=True)
            e = jnp.exp(s - m)                                  # EUP
            p = e * pl.reciprocal(jnp.sum(e, axis=-1, keepdims=True),
                                  approx=True)                  # EUP reciprocal
            oh = jnp.dot(p.astype(jnp.bfloat16), vh,
                         preferred_element_type=jnp.float32)    # (T, D)
            # Per-head Wo block: summing replaces the head concatenate.
            attn_out = attn_out + jnp.dot(
                oh.astype(jnp.bfloat16), wo_ref[h],
                preferred_element_type=jnp.float32)

    # ---- attention output + residual ----
    h1 = x + attn_out

    # ---- post-attention RMSNorm ----
    var2 = jnp.mean(h1 * h1, axis=-1, keepdims=True)
    hn2 = (h1 * jax.lax.rsqrt(var2 + RMS_EPS)) * ln2_ref[...]
    hn2_b = hn2.astype(jnp.bfloat16)

    # ---- SwiGLU MLP + residual ----
    g = jnp.dot(hn2_b, wg_ref[...], preferred_element_type=jnp.float32)
    u = jnp.dot(hn2_b, wu_ref[...], preferred_element_type=jnp.float32)
    act = (g * jax.nn.sigmoid(g)) * u                           # f32 VPU/EUP math
    mlp = jnp.dot(act.astype(jnp.bfloat16), wd_ref[...],
                  preferred_element_type=jnp.float32)

    o_ref[...] = (h1 + mlp).astype(o_ref.dtype)


# ----------------------------- host-side weight prep -------------------------
def prepare_params(raw):
    """Host-side weight preprocessing (all folding happens here, not in-kernel):
      * fold the 1/sqrt(HEAD_DIM) softmax scale into Wq (RoPE is linear),
      * fold the rotate-half permutation into extra Wq_rot / Wk_rot weights
        (rotate_half(x @ W) == x @ (W @ R)),
      * split Q/K/V weights per (KV-)head so the kernel never lane-slices and
        the GQA mapping is a static leading-axis index,
      * reshape Wo into per-head (D, H) blocks so head outputs are summed,
        never concatenated,
      * cast all matmul weights to bf16 (f32 accumulation on the MXU)."""
    half = HEAD_DIM // 2
    rot = jnp.zeros((HEAD_DIM, HEAD_DIM), jnp.float32)
    rot = rot.at[half:, :half].set(-jnp.eye(half, dtype=jnp.float32))
    rot = rot.at[:half, half:].set(jnp.eye(half, dtype=jnp.float32))

    def split_heads(w, n):                       # (H, n*D) -> (n, H, D)
        return jnp.transpose(
            w.astype(jnp.float32).reshape(HIDDEN, n, HEAD_DIM), (1, 0, 2))

    wq = split_heads(raw["wq"], N_HEADS) * (1.0 / math.sqrt(HEAD_DIM))
    wk = split_heads(raw["wk"], N_KV_HEADS)
    wv = split_heads(raw["wv"], N_KV_HEADS)
    wq_rot = jnp.einsum("nhd,de->nhe", wq, rot)
    wk_rot = jnp.einsum("nhd,de->nhe", wk, rot)
    wo = raw["wo"].astype(jnp.float32).reshape(N_HEADS, HEAD_DIM, HIDDEN)

    bf = lambda a: a.astype(jnp.bfloat16)
    return {
        "ln1_w": raw["ln1_w"].astype(jnp.float32).reshape(1, HIDDEN),
        "ln2_w": raw["ln2_w"].astype(jnp.float32).reshape(1, HIDDEN),
        "wq": bf(wq), "wq_rot": bf(wq_rot),
        "wk": bf(wk), "wk_rot": bf(wk_rot), "wv": bf(wv), "wo": bf(wo),
        "wg": bf(raw["wg"]), "wu": bf(raw["wu"]), "wd": bf(raw["wd"]),
    }


def _single_tensorcore_chip():
    """True on chips with one TensorCore per device (v5e/v6e) -> fold batch.
    On multi-TC parts (v4/v5p megacore, v7x) keep the batch grid axis so each
    core gets a grid step.  Any answer is functionally correct."""
    try:
        kind = jax.devices()[0].device_kind.lower()
    except Exception:
        return True
    return not any(tag in kind for tag in ("v7", "v4", "v5p"))


# ----------------------------- wrapper ----------------------------------------
def llama_decoder_layer(hidden_states, kparams, cos, sin, attention_mask_eager,
                        *, fold_batch=None):
    """LlamaDecoderLayer.forward (eager attention; output_attentions=False,
    use_cache=False).  Returns the updated hidden states.

    hidden_states        : (B, S, H) f32
    kparams              : prepare_params(...) output
    cos, sin             : (S, HEAD_DIM) f32 rotary tables (position_ids=arange(S))
    attention_mask_eager : (B, 1, S, S) additive f32 mask
    """
    # TODO(synk): use_cache / past_key_value and output_attentions return paths
    # are not implemented; only the default hidden-state output is produced.
    b, s, h = hidden_states.shape
    if fold_batch is None:
        fold_batch = _single_tensorcore_chip()
    mask3 = attention_mask_eager.reshape(b, s, s).astype(jnp.float32)
    cos32 = cos.astype(jnp.float32)
    sin32 = sin.astype(jnp.float32)

    weights = (kparams["ln1_w"], kparams["wq"], kparams["wq_rot"],
               kparams["wk"], kparams["wk_rot"], kparams["wv"], kparams["wo"],
               kparams["ln2_w"], kparams["wg"], kparams["wu"], kparams["wd"])

    def _resident(a):
        # Full-array block, constant block index -> DMA'd once, VMEM-resident
        # across all grid steps.
        # TODO(synk): at real Llama dims (H=4096, I~14336, bf16) these weights
        # no longer fit VMEM (esp. v7x's 64 MiB); add an "arbitrary" K/N-tiled
        # grid axis over INTERMEDIATE / head blocks with pl.Buffered weight
        # specs and a vmem_limit_bytes override instead of keeping all resident.
        return pl.BlockSpec(a.shape, lambda bi, n=a.ndim: (0,) * n)

    if fold_batch:
        # Single-TC chips: grid steps would serialize and each pays ~0.35 us of
        # fixed pipeline overhead.  Fold batch into sublanes: one grid step over
        # (B*S, H) with a block-diagonal additive mask; also doubles MXU row
        # occupancy of every projection matmul.
        t = b * s
        x2 = hidden_states.reshape(t, h)
        mask_f = jnp.full((t, t), jnp.float32(MASK_NEG))
        for bi in range(b):          # per-batch masks on the diagonal blocks
            mask_f = mask_f.at[bi * s:(bi + 1) * s,
                               bi * s:(bi + 1) * s].set(mask3[bi])
        cos_f = jnp.tile(cos32, (b, 1))
        sin_f = jnp.tile(sin32, (b, 1))
        data = (x2, mask_f, cos_f, sin_f)
        data_specs = [_resident(a) for a in data]
        out_spec = pl.BlockSpec((t, h), lambda bi: (0, 0))
        out_shape = jax.ShapeDtypeStruct((t, h), hidden_states.dtype)
        grid = (1,)
        semantics = ("arbitrary",)
    else:
        # Multi-TC chips (v7x): keep batch as a "parallel" grid axis so each
        # core takes one step and the per-step overhead is hidden.
        data = (hidden_states, mask3, cos32, sin32)
        data_specs = [
            pl.BlockSpec((None, s, h), lambda bi: (bi, 0, 0)),
            pl.BlockSpec((None, s, s), lambda bi: (bi, 0, 0)),
            _resident(cos32), _resident(sin32),
        ]
        out_spec = pl.BlockSpec((None, s, h), lambda bi: (bi, 0, 0))
        out_shape = jax.ShapeDtypeStruct((b, s, h), hidden_states.dtype)
        grid = (b,)
        semantics = ("parallel",)

    # NOTE: output last dim is H=64 (<128 lanes) -> masked partial stores;
    # negligible at these shapes, would matter once the store volume grows.
    out = pl.pallas_call(
        _decoder_layer_kernel,
        out_shape=out_shape,
        grid=grid,
        in_specs=data_specs + [_resident(w) for w in weights],
        out_specs=out_spec,
        compiler_params=pltpu.CompilerParams(dimension_semantics=semantics),
    )(*data, *weights)

    return out.reshape(b, s, h) if fold_batch else out


# ----------------------------- pure-JAX reference -----------------------------
def reference_decoder_layer(x, raw, cos, sin, mask4):
    """f32 reference matching HF LlamaDecoderLayer with eager attention."""
    f32 = lambda a: a.astype(jnp.float32)
    b, s, _ = x.shape

    def rms(v, w):
        var = jnp.mean(v * v, axis=-1, keepdims=True)
        return v * jax.lax.rsqrt(var + RMS_EPS) * w

    def rope(t):
        half = HEAD_DIM // 2
        rot = jnp.concatenate([-t[..., half:], t[..., :half]], axis=-1)
        return t * cos[None, None] + rot * sin[None, None]

    def heads(t, n):
        return t.reshape(b, s, n, HEAD_DIM).transpose(0, 2, 1, 3)

    hn = rms(x, f32(raw["ln1_w"]))
    q = rope(heads(hn @ f32(raw["wq"]), N_HEADS))
    k = rope(heads(hn @ f32(raw["wk"]), N_KV_HEADS))
    v = heads(hn @ f32(raw["wv"]), N_KV_HEADS)
    k = jnp.repeat(k, N_REP, axis=1)          # HF repeat_kv
    v = jnp.repeat(v, N_REP, axis=1)
    scores = jnp.einsum("bhqd,bhkd->bhqk", q, k) / math.sqrt(HEAD_DIM) + mask4
    probs = jax.nn.softmax(scores, axis=-1)
    attn = jnp.einsum("bhqk,bhkd->bhqd", probs, v)
    attn = attn.transpose(0, 2, 1, 3).reshape(b, s, N_HEADS * HEAD_DIM)
    h1 = x + attn @ f32(raw["wo"])
    hn2 = rms(h1, f32(raw["ln2_w"]))
    g = hn2 @ f32(raw["wg"])
    u = hn2 @ f32(raw["wu"])
    return h1 + (g * jax.nn.sigmoid(g) * u) @ f32(raw["wd"])


# ----------------------------- main -------------------------------------------
if __name__ == "__main__":
    key = jax.random.PRNGKey(0)
    k_x, k_q, k_k, k_v, k_o, k_g, k_u, k_d, k_l1, k_l2 = jax.random.split(key, 10)

    def init(k, shape):
        return (0.02 * jax.random.normal(k, shape, jnp.float32)).astype(jnp.bfloat16)

    raw = {  # torch-style parameters, transposed to (in_features, out_features)
        "ln1_w": 1.0 + 0.1 * jax.random.normal(k_l1, (HIDDEN,), jnp.float32),
        "ln2_w": 1.0 + 0.1 * jax.random.normal(k_l2, (HIDDEN,), jnp.float32),
        "wq": init(k_q, (HIDDEN, N_HEADS * HEAD_DIM)),
        "wk": init(k_k, (HIDDEN, N_KV_HEADS * HEAD_DIM)),
        "wv": init(k_v, (HIDDEN, N_KV_HEADS * HEAD_DIM)),
        "wo": init(k_o, (N_HEADS * HEAD_DIM, HIDDEN)),
        "wg": init(k_g, (HIDDEN, INTERMEDIATE)),
        "wu": init(k_u, (HIDDEN, INTERMEDIATE)),
        "wd": init(k_d, (INTERMEDIATE, HIDDEN)),
    }
    kparams = prepare_params(raw)

    hidden_states = jax.random.normal(k_x, (BATCH, SEQ, HIDDEN), jnp.float32)

    # rotary embedding tables (position_ids = arange(SEQ))
    inv_freq = 1.0 / (ROPE_THETA ** (
        jnp.arange(0, HEAD_DIM, 2, dtype=jnp.float32) / HEAD_DIM))
    freqs = jnp.outer(jnp.arange(SEQ, dtype=jnp.float32), inv_freq)   # (S, D/2)
    emb = jnp.concatenate([freqs, freqs], axis=-1)                    # (S, D)
    cos, sin = jnp.cos(emb), jnp.sin(emb)

    # eager additive causal mask: (B, 1, S, S)
    causal = jnp.tril(jnp.ones((SEQ, SEQ), dtype=bool))
    attention_mask_eager = jnp.where(causal, 0.0, MASK_NEG).astype(jnp.float32)
    attention_mask_eager = jnp.broadcast_to(
        attention_mask_eager[None, None], (BATCH, 1, SEQ, SEQ))

    # Exercise both execution strategies plus the device-gated default.
    out_fold = llama_decoder_layer(hidden_states, kparams, cos, sin,
                                   attention_mask_eager, fold_batch=True)
    out_grid = llama_decoder_layer(hidden_states, kparams, cos, sin,
                                   attention_mask_eager, fold_batch=False)
    out_auto = llama_decoder_layer(hidden_states, kparams, cos, sin,
                                   attention_mask_eager)
    out_fold, out_grid, out_auto = jax.block_until_ready(
        (out_fold, out_grid, out_auto))

    ref = reference_decoder_layer(hidden_states, raw, cos, sin,
                                  attention_mask_eager)

    assert out_auto.shape == (BATCH, SEQ, HIDDEN)
    assert bool(jnp.all(jnp.isfinite(out_fold)))
    assert bool(jnp.all(jnp.isfinite(out_grid)))
    err_fold = float(jnp.max(jnp.abs(out_fold - ref)))
    err_grid = float(jnp.max(jnp.abs(out_grid - ref)))
    err_path = float(jnp.max(jnp.abs(out_fold - out_grid)))
    assert err_fold < 2e-2 and err_grid < 2e-2 and err_path < 1e-3, (
        err_fold, err_grid, err_path)
    print("KERNEL_OK")
</pallas_src>

<mosaic_0001>
module attributes {stable_mosaic.version = 11 : i64} {
  func.func @_decoder_layer_kernel(%arg0: i32, %arg1: memref<16x64xf32, #tpu.memory_space<vmem>>, %arg2: memref<16x16xf32, #tpu.memory_space<vmem>>, %arg3: memref<16x16xf32, #tpu.memory_space<vmem>>, %arg4: memref<16x16xf32, #tpu.memory_space<vmem>>, %arg5: memref<1x64xf32, #tpu.memory_space<vmem>>, %arg6: memref<4x64x16xbf16, #tpu.memory_space<vmem>>, %arg7: memref<4x64x16xbf16, #tpu.memory_space<vmem>>, %arg8: memref<2x64x16xbf16, #tpu.memory_space<vmem>>, %arg9: memref<2x64x16xbf16, #tpu.memory_space<vmem>>, %arg10: memref<2x64x16xbf16, #tpu.memory_space<vmem>>, %arg11: memref<4x16x64xbf16, #tpu.memory_space<vmem>>, %arg12: memref<1x64xf32, #tpu.memory_space<vmem>>, %arg13: memref<64x128xbf16, #tpu.memory_space<vmem>>, %arg14: memref<64x128xbf16, #tpu.memory_space<vmem>>, %arg15: memref<128x64xbf16, #tpu.memory_space<vmem>>, %arg16: memref<16x64xf32, #tpu.memory_space<vmem>>) attributes {dimension_semantics = [#tpu.dimension_semantics<arbitrary>], iteration_bounds = array<i64: 1>, scalar_prefetch = 0 : i64, scratch_operands = 0 : i64, tpu.core_type = #tpu.core_type<tc>, window_params = [{pipeline_mode = #tpu.pipeline_mode<synchronous>, transform_indices = @transform_0, window_bounds = array<i64: 16, 64>}, {pipeline_mode = #tpu.pipeline_mode<synchronous>, transform_indices = @transform_1, window_bounds = array<i64: 16, 16>}, {pipeline_mode = #tpu.pipeline_mode<synchronous>, transform_indices = @transform_2, window_bounds = array<i64: 16, 16>}, {pipeline_mode = #tpu.pipeline_mode<synchronous>, transform_indices = @transform_3, window_bounds = array<i64: 16, 16>}, {pipeline_mode = #tpu.pipeline_mode<synchronous>, transform_indices = @transform_4, window_bounds = array<i64: 1, 64>}, {pipeline_mode = #tpu.pipeline_mode<synchronous>, transform_indices = @transform_5, window_bounds = array<i64: 4, 64, 16>}, {pipeline_mode = #tpu.pipeline_mode<synchronous>, transform_indices = @transform_6, window_bounds = array<i64: 4, 64, 16>}, {pipeline_mode = #tpu.pipeline_mode<synchronous>, transform_indices = @transform_7, window_bounds = array<i64: 2, 64, 16>}, {pipeline_mode = #tpu.pipeline_mode<synchronous>, transform_indices = @transform_8, window_bounds = array<i64: 2, 64, 16>}, {pipeline_mode = #tpu.pipeline_mode<synchronous>, transform_indices = @transform_9, window_bounds = array<i64: 2, 64, 16>}, {pipeline_mode = #tpu.pipeline_mode<synchronous>, transform_indices = @transform_10, window_bounds = array<i64: 4, 16, 64>}, {pipeline_mode = #tpu.pipeline_mode<synchronous>, transform_indices = @transform_11, window_bounds = array<i64: 1, 64>}, {pipeline_mode = #tpu.pipeline_mode<synchronous>, transform_indices = @transform_12, window_bounds = array<i64: 64, 128>}, {pipeline_mode = #tpu.pipeline_mode<synchronous>, transform_indices = @transform_13, window_bounds = array<i64: 64, 128>}, {pipeline_mode = #tpu.pipeline_mode<synchronous>, transform_indices = @transform_14, window_bounds = array<i64: 128, 64>}, {pipeline_mode = #tpu.pipeline_mode<synchronous>, transform_indices = @transform_15, window_bounds = array<i64: 16, 64>}]} {
    %c0 = arith.constant 0 : index
    %c0_0 = arith.constant 0 : index
    %0 = vector.load %arg1[%c0, %c0_0] : memref<16x64xf32, #tpu.memory_space<vmem>>, vector<16x64xf32>
    %1 = arith.mulf %0, %0 : vector<16x64xf32>
    %cst = arith.constant dense<0.000000e+00> : vector<16xf32>
    %2 = vector.multi_reduction <add>, %1, %cst [1] : vector<16x64xf32> to vector<16xf32>
    %3 = vector.shape_cast %2 : vector<16xf32> to vector<16x1xf32>
    %cst_1 = arith.constant 6.400000e+01 : f32
    %4 = vector.broadcast %cst_1 : f32 to vector<16x1xf32>
    %5 = arith.divf %3, %4 : vector<16x1xf32>
    %cst_2 = arith.constant 9.99999997E-7 : f32
    %6 = vector.broadcast %cst_2 : f32 to vector<16x1xf32>
    %7 = arith.addf %5, %6 : vector<16x1xf32>
    %8 = math.rsqrt %7 : vector<16x1xf32>
    %9 = vector.broadcast %8 : vector<16x1xf32> to vector<16x64xf32>
    %10 = arith.mulf %0, %9 : vector<16x64xf32>
    %c0_3 = arith.constant 0 : index
    %c0_4 = arith.constant 0 : index
    %11 = vector.load %arg5[%c0_3, %c0_4] : memref<1x64xf32, #tpu.memory_space<vmem>>, vector<1x64xf32>
    %12 = vector.broadcast %11 : vector<1x64xf32> to vector<16x64xf32>
    %13 = arith.mulf %10, %12 : vector<16x64xf32>
    %14 = arith.truncf %13 : vector<16x64xf32> to vector<16x64xbf16>
    %c0_5 = arith.constant 0 : index
    %c0_6 = arith.constant 0 : index
    %15 = vector.load %arg3[%c0_5, %c0_6] : memref<16x16xf32, #tpu.memory_space<vmem>>, vector<16x16xf32>
    %c0_7 = arith.constant 0 : index
    %c0_8 = arith.constant 0 : index
    %16 = vector.load %arg4[%c0_7, %c0_8] : memref<16x16xf32, #tpu.memory_space<vmem>>, vector<16x16xf32>
    %c0_9 = arith.constant 0 : index
    %c0_10 = arith.constant 0 : index
    %17 = vector.load %arg2[%c0_9, %c0_10] : memref<16x16xf32, #tpu.memory_space<vmem>>, vector<16x16xf32>
    %cst_11 = arith.constant 0.000000e+00 : f32
    %18 = vector.broadcast %cst_11 : f32 to vector<16x64xf32>
    %c0_12 = arith.constant 0 : index
    %c0_13 = arith.constant 0 : index
    %c0_14 = arith.constant 0 : index
    %19 = vector.load %arg8[%c0_12, %c0_13, %c0_14] : memref<2x64x16xbf16, #tpu.memory_space<vmem>>, vector<1x64x16xbf16>
    %20 = vector.shape_cast %19 : vector<1x64x16xbf16> to vector<64x16xbf16>
    %cst_15 = arith.constant dense<0.000000e+00> : vector<16x16xf32>
    %21 = tpu.matmul %14, %20, %cst_15 {dimension_numbers = #tpu.dot_dimension_numbers<[1], [0], [0], [1], [0, 0, 1, 1], [], []>} : vector<16x64xbf16>, vector<64x16xbf16>, vector<16x16xf32> -> vector<16x16xf32>
    %c0_16 = arith.constant 0 : index
    %c0_17 = arith.constant 0 : index
    %c0_18 = arith.constant 0 : index
    %22 = vector.load %arg9[%c0_16, %c0_17, %c0_18] : memref<2x64x16xbf16, #tpu.memory_space<vmem>>, vector<1x64x16xbf16>
    %23 = vector.shape_cast %22 : vector<1x64x16xbf16> to vector<64x16xbf16>
    %cst_19 = arith.constant dense<0.000000e+00> : vector<16x16xf32>
    %24 = tpu.matmul %14, %23, %cst_19 {dimension_numbers = #tpu.dot_dimension_numbers<[1], [0], [0], [1], [0, 0, 1, 1], [], []>} : vector<16x64xbf16>, vector<64x16xbf16>, vector<16x16xf32> -> vector<16x16xf32>
    %25 = arith.mulf %21, %15 : vector<16x16xf32>
    %26 = arith.mulf %24, %16 : vector<16x16xf32>
    %27 = arith.addf %25, %26 : vector<16x16xf32>
    %28 = arith.truncf %27 : vector<16x16xf32> to vector<16x16xbf16>
    %c0_20 = arith.constant 0 : index
    %c0_21 = arith.constant 0 : index
    %c0_22 = arith.constant 0 : index
    %29 = vector.load %arg10[%c0_20, %c0_21, %c0_22] : memref<2x64x16xbf16, #tpu.memory_space<vmem>>, vector<1x64x16xbf16>
    %30 = vector.shape_cast %29 : vector<1x64x16xbf16> to vector<64x16xbf16>
    %cst_23 = arith.constant dense<0.000000e+00> : vector<16x16xf32>
    %31 = tpu.matmul %14, %30, %cst_23 {dimension_numbers = #tpu.dot_dimension_numbers<[1], [0], [0], [1], [0, 0, 1, 1], [], []>} : vector<16x64xbf16>, vector<64x16xbf16>, vector<16x16xf32> -> vector<16x16xf32>
    %32 = arith.truncf %31 : vector<16x16xf32> to vector<16x16xbf16>
    %c0_24 = arith.constant 0 : index
    %c0_25 = arith.constant 0 : index
    %c0_26 = arith.constant 0 : index
    %33 = vector.load %arg6[%c0_24, %c0_25, %c0_26] : memref<4x64x16xbf16, #tpu.memory_space<vmem>>, vector<1x64x16xbf16>
    %34 = vector.shape_cast %33 : vector<1x64x16xbf16> to vector<64x16xbf16>
    %cst_27 = arith.constant dense<0.000000e+00> : vector<16x16xf32>
    %35 = tpu.matmul %14, %34, %cst_27 {dimension_numbers = #tpu.dot_dimension_numbers<[1], [0], [0], [1], [0, 0, 1, 1], [], []>} : vector<16x64xbf16>, vector<64x16xbf16>, vector<16x16xf32> -> vector<16x16xf32>
    %c0_28 = arith.constant 0 : index
    %c0_29 = arith.constant 0 : index
    %c0_30 = arith.constant 0 : index
    %36 = vector.load %arg7[%c0_28, %c0_29, %c0_30] : memref<4x64x16xbf16, #tpu.memory_space<vmem>>, vector<1x64x16xbf16>
    %37 = vector.shape_cast %36 : vector<1x64x16xbf16> to vector<64x16xbf16>
    %cst_31 = arith.constant dense<0.000000e+00> : vector<16x16xf32>
    %38 = tpu.matmul %14, %37, %cst_31 {dimension_numbers = #tpu.dot_dimension_numbers<[1], [0], [0], [1], [0, 0, 1, 1], [], []>} : vector<16x64xbf16>, vector<64x16xbf16>, vector<16x16xf32> -> vector<16x16xf32>
    %39 = arith.mulf %35, %15 : vector<16x16xf32>
    %40 = arith.mulf %38, %16 : vector<16x16xf32>
    %41 = arith.addf %39, %40 : vector<16x16xf32>
    %42 = arith.truncf %41 : vector<16x16xf32> to vector<16x16xbf16>
    %cst_32 = arith.constant dense<0.000000e+00> : vector<16x16xf32>
    %43 = tpu.matmul %42, %28, %cst_32 {dimension_numbers = #tpu.dot_dimension_numbers<[1], [1], [0], [0], [0, 0, 1, 0], [], []>} : vector<16x16xbf16>, vector<16x16xbf16>, vector<16x16xf32> -> vector<16x16xf32>
    %44 = arith.addf %43, %17 : vector<16x16xf32>
    %cst_33 = arith.constant dense<0xFF800000> : vector<16xf32>
    %45 = vector.multi_reduction <maximumf>, %44, %cst_33 [1] : vector<16x16xf32> to vector<16xf32>
    %46 = vector.shape_cast %45 : vector<16xf32> to vector<16x1xf32>
    %47 = vector.broadcast %46 : vector<16x1xf32> to vector<16x16xf32>
    %48 = arith.subf %44, %47 : vector<16x16xf32>
    %49 = math.exp %48 : vector<16x16xf32>
    %cst_34 = arith.constant dense<0.000000e+00> : vector<16xf32>
    %50 = vector.multi_reduction <add>, %49, %cst_34 [1] : vector<16x16xf32> to vector<16xf32>
    %51 = vector.shape_cast %50 : vector<16xf32> to vector<16x1xf32>
    %52 = tpu.reciprocal %51 {approx = true} : vector<16x1xf32> -> vector<16x1xf32>
    %53 = vector.broadcast %52 : vector<16x1xf32> to vector<16x16xf32>
    %54 = arith.mulf %49, %53 : vector<16x16xf32>
    %55 = arith.truncf %54 : vector<16x16xf32> to vector<16x16xbf16>
    %cst_35 = arith.constant dense<0.000000e+00> : vector<16x16xf32>
    %56 = tpu.matmul %55, %32, %cst_35 {dimension_numbers = #tpu.dot_dimension_numbers<[1], [0], [0], [1], [0, 0, 1, 1], [], []>} : vector<16x16xbf16>, vector<16x16xbf16>, vector<16x16xf32> -> vector<16x16xf32>
    %57 = arith.truncf %56 : vector<16x16xf32> to vector<16x16xbf16>
    %c0_36 = arith.constant 0 : index
    %c0_37 = arith.constant 0 : index
    %c0_38 = arith.constant 0 : index
    %58 = vector.load %arg11[%c0_36, %c0_37, %c0_38] : memref<4x16x64xbf16, #tpu.memory_space<vmem>>, vector<1x16x64xbf16>
    %59 = vector.shape_cast %58 : vector<1x16x64xbf16> to vector<16x64xbf16>
    %cst_39 = arith.constant dense<0.000000e+00> : vector<16x64xf32>
    %60 = tpu.matmul %57, %59, %cst_39 {dimension_numbers = #tpu.dot_dimension_numbers<[1], [0], [0], [1], [0, 0, 1, 1], [], []>} : vector<16x16xbf16>, vector<16x64xbf16>, vector<16x64xf32> -> vector<16x64xf32>
    %61 = arith.addf %18, %60 : vector<16x64xf32>
    %c1 = arith.constant 1 : index
    %c0_40 = arith.constant 0 : index
    %c0_41 = arith.constant 0 : index
    %62 = vector.load %arg6[%c1, %c0_40, %c0_41] : memref<4x64x16xbf16, #tpu.memory_space<vmem>>, vector<1x64x16xbf16>
    %63 = vector.shape_cast %62 : vector<1x64x16xbf16> to vector<64x16xbf16>
    %cst_42 = arith.constant dense<0.000000e+00> : vector<16x16xf32>
    %64 = tpu.matmul %14, %63, %cst_42 {dimension_numbers = #tpu.dot_dimension_numbers<[1], [0], [0], [1], [0, 0, 1, 1], [], []>} : vector<16x64xbf16>, vector<64x16xbf16>, vector<16x16xf32> -> vector<16x16xf32>
    %c1_43 = arith.constant 1 : index
    %c0_44 = arith.constant 0 : index
    %c0_45 = arith.constant 0 : index
    %65 = vector.load %arg7[%c1_43, %c0_44, %c0_45] : memref<4x64x16xbf16, #tpu.memory_space<vmem>>, vector<1x64x16xbf16>
    %66 = vector.shape_cast %65 : vector<1x64x16xbf16> to vector<64x16xbf16>
    %cst_46 = arith.constant dense<0.000000e+00> : vector<16x16xf32>
    %67 = tpu.matmul %14, %66, %cst_46 {dimension_numbers = #tpu.dot_dimension_numbers<[1], [0], [0], [1], [0, 0, 1, 1], [], []>} : vector<16x64xbf16>, vector<64x16xbf16>, vector<16x16xf32> -> vector<16x16xf32>
    %68 = arith.mulf %64, %15 : vector<16x16xf32>
    %69 = arith.mulf %67, %16 : vector<16x16xf32>
    %70 = arith.addf %68, %69 : vector<16x16xf32>
    %71 = arith.truncf %70 : vector<16x16xf32> to vector<16x16xbf16>
    %cst_47 = arith.constant dense<0.000000e+00> : vector<16x16xf32>
    %72 = tpu.matmul %71, %28, %cst_47 {dimension_numbers = #tpu.dot_dimension_numbers<[1], [1], [0], [0], [0, 0, 1, 0], [], []>} : vector<16x16xbf16>, vector<16x16xbf16>, vector<16x16xf32> -> vector<16x16xf32>
    %73 = arith.addf %72, %17 : vector<16x16xf32>
    %cst_48 = arith.constant dense<0xFF800000> : vector<16xf32>
    %74 = vector.multi_reduction <maximumf>, %73, %cst_48 [1] : vector<16x16xf32> to vector<16xf32>
    %75 = vector.shape_cast %74 : vector<16xf32> to vector<16x1xf32>
    %76 = vector.broadcast %75 : vector<16x1xf32> to vector<16x16xf32>
    %77 = arith.subf %73, %76 : vector<16x16xf32>
    %78 = math.exp %77 : vector<16x16xf32>
    %cst_49 = arith.constant dense<0.000000e+00> : vector<16xf32>
    %79 = vector.multi_reduction <add>, %78, %cst_49 [1] : vector<16x16xf32> to vector<16xf32>
    %80 = vector.shape_cast %79 : vector<16xf32> to vector<16x1xf32>
    %81 = tpu.reciprocal %80 {approx = true} : vector<16x1xf32> -> vector<16x1xf32>
    %82 = vector.broadcast %81 : vector<16x1xf32> to vector<16x16xf32>
    %83 = arith.mulf %78, %82 : vector<16x16xf32>
    %84 = arith.truncf %83 : vector<16x16xf32> to vector<16x16xbf16>
    %cst_50 = arith.constant dense<0.000000e+00> : vector<16x16xf32>
    %85 = tpu.matmul %84, %32, %cst_50 {dimension_numbers = #tpu.dot_dimension_numbers<[1], [0], [0], [1], [0, 0, 1, 1], [], []>} : vector<16x16xbf16>, vector<16x16xbf16>, vector<16x16xf32> -> vector<16x16xf32>
    %86 = arith.truncf %85 : vector<16x16xf32> to vector<16x16xbf16>
    %c1_51 = arith.constant 1 : index
    %c0_52 = arith.constant 0 : index
    %c0_53 = arith.constant 0 : index
    %87 = vector.load %arg11[%c1_51, %c0_52, %c0_53] : memref<4x16x64xbf16, #tpu.memory_space<vmem>>, vector<1x16x64xbf16>
    %88 = vector.shape_cast %87 : vector<1x16x64xbf16> to vector<16x64xbf16>
    %cst_54 = arith.constant dense<0.000000e+00> : vector<16x64xf32>
    %89 = tpu.matmul %86, %88, %cst_54 {dimension_numbers = #tpu.dot_dimension_numbers<[1], [0], [0], [1], [0, 0, 1, 1], [], []>} : vector<16x16xbf16>, vector<16x64xbf16>, vector<16x64xf32> -> vector<16x64xf32>
    %90 = arith.addf %61, %89 : vector<16x64xf32>
    %c1_55 = arith.constant 1 : index
    %c0_56 = arith.constant 0 : index
    %c0_57 = arith.constant 0 : index
    %91 = vector.load %arg8[%c1_55, %c0_56, %c0_57] : memref<2x64x16xbf16, #tpu.memory_space<vmem>>, vector<1x64x16xbf16>
    %92 = vector.shape_cast %91 : vector<1x64x16xbf16> to vector<64x16xbf16>
    %cst_58 = arith.constant dense<0.000000e+00> : vector<16x16xf32>
    %93 = tpu.matmul %14, %92, %cst_58 {dimension_numbers = #tpu.dot_dimension_numbers<[1], [0], [0], [1], [0, 0, 1, 1], [], []>} : vector<16x64xbf16>, vector<64x16xbf16>, vector<16x16xf32> -> vector<16x16xf32>
    %c1_59 = arith.constant 1 : index
    %c0_60 = arith.constant 0 : index
    %c0_61 = arith.constant 0 : index
    %94 = vector.load %arg9[%c1_59, %c0_60, %c0_61] : memref<2x64x16xbf16, #tpu.memory_space<vmem>>, vector<1x64x16xbf16>
    %95 = vector.shape_cast %94 : vector<1x64x16xbf16> to vector<64x16xbf16>
    %cst_62 = arith.constant dense<0.000000e+00> : vector<16x16xf32>
    %96 = tpu.matmul %14, %95, %cst_62 {dimension_numbers = #tpu.dot_dimension_numbers<[1], [0], [0], [1], [0, 0, 1, 1], [], []>} : vector<16x64xbf16>, vector<64x16xbf16>, vector<16x16xf32> -> vector<16x16xf32>
    %97 = arith.mulf %93, %15 : vector<16x16xf32>
    %98 = arith.mulf %96, %16 : vector<16x16xf32>
    %99 = arith.addf %97, %98 : vector<16x16xf32>
    %100 = arith.truncf %99 : vector<16x16xf32> to vector<16x16xbf16>
    %c1_63 = arith.constant 1 : index
    %c0_64 = arith.constant 0 : index
    %c0_65 = arith.constant 0 : index
    %101 = vector.load %arg10[%c1_63, %c0_64, %c0_65] : memref<2x64x16xbf16, #tpu.memory_space<vmem>>, vector<1x64x16xbf16>
    %102 = vector.shape_cast %101 : vector<1x64x16xbf16> to vector<64x16xbf16>
    %cst_66 = arith.constant dense<0.000000e+00> : vector<16x16xf32>
    %103 = tpu.matmul %14, %102, %cst_66 {dimension_numbers = #tpu.dot_dimension_numbers<[1], [0], [0], [1], [0, 0, 1, 1], [], []>} : vector<16x64xbf16>, vector<64x16xbf16>, vector<16x16xf32> -> vector<16x16xf32>
    %104 = arith.truncf %103 : vector<16x16xf32> to vector<16x16xbf16>
    %c2 = arith.constant 2 : index
    %c0_67 = arith.constant 0 : index
    %c0_68 = arith.constant 0 : index
    %105 = vector.load %arg6[%c2, %c0_67, %c0_68] : memref<4x64x16xbf16, #tpu.memory_space<vmem>>, vector<1x64x16xbf16>
    %106 = vector.shape_cast %105 : vector<1x64x16xbf16> to vector<64x16xbf16>
    %cst_69 = arith.constant dense<0.000000e+00> : vector<16x16xf32>
    %107 = tpu.matmul %14, %106, %cst_69 {dimension_numbers = #tpu.dot_dimension_numbers<[1], [0], [0], [1], [0, 0, 1, 1], [], []>} : vector<16x64xbf16>, vector<64x16xbf16>, vector<16x16xf32> -> vector<16x16xf32>
    %c2_70 = arith.constant 2 : index
    %c0_71 = arith.constant 0 : index
    %c0_72 = arith.constant 0 : index
    %108 = vector.load %arg7[%c2_70, %c0_71, %c0_72] : memref<4x64x16xbf16, #tpu.memory_space<vmem>>, vector<1x64x16xbf16>
    %109 = vector.shape_cast %108 : vector<1x64x16xbf16> to vector<64x16xbf16>
    %cst_73 = arith.constant dense<0.000000e+00> : vector<16x16xf32>
    %110 = tpu.matmul %14, %109, %cst_73 {dimension_numbers = #tpu.dot_dimension_numbers<[1], [0], [0], [1], [0, 0, 1, 1], [], []>} : vector<16x64xbf16>, vector<64x16xbf16>, vector<16x16xf32> -> vector<16x16xf32>
    %111 = arith.mulf %107, %15 : vector<16x16xf32>
    %112 = arith.mulf %110, %16 : vector<16x16xf32>
    %113 = arith.addf %111, %112 : vector<16x16xf32>
    %114 = arith.truncf %113 : vector<16x16xf32> to vector<16x16xbf16>
    %cst_74 = arith.constant dense<0.000000e+00> : vector<16x16xf32>
    %115 = tpu.matmul %114, %100, %cst_74 {dimension_numbers = #tpu.dot_dimension_numbers<[1], [1], [0], [0], [0, 0, 1, 0], [], []>} : vector<16x16xbf16>, vector<16x16xbf16>, vector<16x16xf32> -> vector<16x16xf32>
    %116 = arith.addf %115, %17 : vector<16x16xf32>
    %cst_75 = arith.constant dense<0xFF800000> : vector<16xf32>
    %117 = vector.multi_reduction <maximumf>, %116, %cst_75 [1] : vector<16x16xf32> to vector<16xf32>
    %118 = vector.shape_cast %117 : vector<16xf32> to vector<16x1xf32>
    %119 = vector.broadcast %118 : vector<16x1xf32> to vector<16x16xf32>
    %120 = arith.subf %116, %119 : vector<16x16xf32>
    %121 = math.exp %120 : vector<16x16xf32>
    %cst_76 = arith.constant dense<0.000000e+00> : vector<16xf32>
    %122 = vector.multi_reduction <add>, %121, %cst_76 [1] : vector<16x16xf32> to vector<16xf32>
    %123 = vector.shape_cast %122 : vector<16xf32> to vector<16x1xf32>
    %124 = tpu.reciprocal %123 {approx = true} : vector<16x1xf32> -> vector<16x1xf32>
    %125 = vector.broadcast %124 : vector<16x1xf32> to vector<16x16xf32>
    %126 = arith.mulf %121, %125 : vector<16x16xf32>
    %127 = arith.truncf %126 : vector<16x16xf32> to vector<16x16xbf16>
    %cst_77 = arith.constant dense<0.000000e+00> : vector<16x16xf32>
    %128 = tpu.matmul %127, %104, %cst_77 {dimension_numbers = #tpu.dot_dimension_numbers<[1], [0], [0], [1], [0, 0, 1, 1], [], []>} : vector<16x16xbf16>, vector<16x16xbf16>, vector<16x16xf32> -> vector<16x16xf32>
    %129 = arith.truncf %128 : vector<16x16xf32> to vector<16x16xbf16>
    %c2_78 = arith.constant 2 : index
    %c0_79 = arith.constant 0 : index
    %c0_80 = arith.constant 0 : index
    %130 = vector.load %arg11[%c2_78, %c0_79, %c0_80] : memref<4x16x64xbf16, #tpu.memory_space<vmem>>, vector<1x16x64xbf16>
    %131 = vector.shape_cast %130 : vector<1x16x64xbf16> to vector<16x64xbf16>
    %cst_81 = arith.constant dense<0.000000e+00> : vector<16x64xf32>
    %132 = tpu.matmul %129, %131, %cst_81 {dimension_numbers = #tpu.dot_dimension_numbers<[1], [0], [0], [1], [0, 0, 1, 1], [], []>} : vector<16x16xbf16>, vector<16x64xbf16>, vector<16x64xf32> -> vector<16x64xf32>
    %133 = arith.addf %90, %132 : vector<16x64xf32>
    %c3 = arith.constant 3 : index
    %c0_82 = arith.constant 0 : index
    %c0_83 = arith.constant 0 : index
    %134 = vector.load %arg6[%c3, %c0_82, %c0_83] : memref<4x64x16xbf16, #tpu.memory_space<vmem>>, vector<1x64x16xbf16>
    %135 = vector.shape_cast %134 : vector<1x64x16xbf16> to vector<64x16xbf16>
    %cst_84 = arith.constant dense<0.000000e+00> : vector<16x16xf32>
    %136 = tpu.matmul %14, %135, %cst_84 {dimension_numbers = #tpu.dot_dimension_numbers<[1], [0], [0], [1], [0, 0, 1, 1], [], []>} : vector<16x64xbf16>, vector<64x16xbf16>, vector<16x16xf32> -> vector<16x16xf32>
    %c3_85 = arith.constant 3 : index
    %c0_86 = arith.constant 0 : index
    %c0_87 = arith.constant 0 : index
    %137 = vector.load %arg7[%c3_85, %c0_86, %c0_87] : memref<4x64x16xbf16, #tpu.memory_space<vmem>>, vector<1x64x16xbf16>
    %138 = vector.shape_cast %137 : vector<1x64x16xbf16> to vector<64x16xbf16>
    %cst_88 = arith.constant dense<0.000000e+00> : vector<16x16xf32>
    %139 = tpu.matmul %14, %138, %cst_88 {dimension_numbers = #tpu.dot_dimension_numbers<[1], [0], [0], [1], [0, 0, 1, 1], [], []>} : vector<16x64xbf16>, vector<64x16xbf16>, vector<16x16xf32> -> vector<16x16xf32>
    %140 = arith.mulf %136, %15 : vector<16x16xf32>
    %141 = arith.mulf %139, %16 : vector<16x16xf32>
    %142 = arith.addf %140, %141 : vector<16x16xf32>
    %143 = arith.truncf %142 : vector<16x16xf32> to vector<16x16xbf16>
    %cst_89 = arith.constant dense<0.000000e+00> : vector<16x16xf32>
    %144 = tpu.matmul %143, %100, %cst_89 {dimension_numbers = #tpu.dot_dimension_numbers<[1], [1], [0], [0], [0, 0, 1, 0], [], []>} : vector<16x16xbf16>, vector<16x16xbf16>, vector<16x16xf32> -> vector<16x16xf32>
    %145 = arith.addf %144, %17 : vector<16x16xf32>
    %cst_90 = arith.constant dense<0xFF800000> : vector<16xf32>
    %146 = vector.multi_reduction <maximumf>, %145, %cst_90 [1] : vector<16x16xf32> to vector<16xf32>
    %147 = vector.shape_cast %146 : vector<16xf32> to vector<16x1xf32>
    %148 = vector.broadcast %147 : vector<16x1xf32> to vector<16x16xf32>
    %149 = arith.subf %145, %148 : vector<16x16xf32>
    %150 = math.exp %149 : vector<16x16xf32>
    %cst_91 = arith.constant dense<0.000000e+00> : vector<16xf32>
    %151 = vector.multi_reduction <add>, %150, %cst_91 [1] : vector<16x16xf32> to vector<16xf32>
    %152 = vector.shape_cast %151 : vector<16xf32> to vector<16x1xf32>
    %153 = tpu.reciprocal %152 {approx = true} : vector<16x1xf32> -> vector<16x1xf32>
    %154 = vector.broadcast %153 : vector<16x1xf32> to vector<16x16xf32>
    %155 = arith.mulf %150, %154 : vector<16x16xf32>
    %156 = arith.truncf %155 : vector<16x16xf32> to vector<16x16xbf16>
    %cst_92 = arith.constant dense<0.000000e+00> : vector<16x16xf32>
    %157 = tpu.matmul %156, %104, %cst_92 {dimension_numbers = #tpu.dot_dimension_numbers<[1], [0], [0], [1], [0, 0, 1, 1], [], []>} : vector<16x16xbf16>, vector<16x16xbf16>, vector<16x16xf32> -> vector<16x16xf32>
    %158 = arith.truncf %157 : vector<16x16xf32> to vector<16x16xbf16>
    %c3_93 = arith.constant 3 : index
    %c0_94 = arith.constant 0 : index
    %c0_95 = arith.constant 0 : index
    %159 = vector.load %arg11[%c3_93, %c0_94, %c0_95] : memref<4x16x64xbf16, #tpu.memory_space<vmem>>, vector<1x16x64xbf16>
    %160 = vector.shape_cast %159 : vector<1x16x64xbf16> to vector<16x64xbf16>
    %cst_96 = arith.constant dense<0.000000e+00> : vector<16x64xf32>
    %161 = tpu.matmul %158, %160, %cst_96 {dimension_numbers = #tpu.dot_dimension_numbers<[1], [0], [0], [1], [0, 0, 1, 1], [], []>} : vector<16x16xbf16>, vector<16x64xbf16>, vector<16x64xf32> -> vector<16x64xf32>
    %162 = arith.addf %133, %161 : vector<16x64xf32>
    %163 = arith.addf %0, %162 : vector<16x64xf32>
    %164 = arith.mulf %163, %163 : vector<16x64xf32>
    %cst_97 = arith.constant dense<0.000000e+00> : vector<16xf32>
    %165 = vector.multi_reduction <add>, %164, %cst_97 [1] : vector<16x64xf32> to vector<16xf32>
    %166 = vector.shape_cast %165 : vector<16xf32> to vector<16x1xf32>
    %cst_98 = arith.constant 6.400000e+01 : f32
    %167 = vector.broadcast %cst_98 : f32 to vector<16x1xf32>
    %168 = arith.divf %166, %167 : vector<16x1xf32>
    %cst_99 = arith.constant 9.99999997E-7 : f32
    %169 = vector.broadcast %cst_99 : f32 to vector<16x1xf32>
    %170 = arith.addf %168, %169 : vector<16x1xf32>
    %171 = math.rsqrt %170 : vector<16x1xf32>
    %172 = vector.broadcast %171 : vector<16x1xf32> to vector<16x64xf32>
    %173 = arith.mulf %163, %172 : vector<16x64xf32>
    %c0_100 = arith.constant 0 : index
    %c0_101 = arith.constant 0 : index
    %174 = vector.load %arg12[%c0_100, %c0_101] : memref<1x64xf32, #tpu.memory_space<vmem>>, vector<1x64xf32>
    %175 = vector.broadcast %174 : vector<1x64xf32> to vector<16x64xf32>
    %176 = arith.mulf %173, %175 : vector<16x64xf32>
    %177 = arith.truncf %176 : vector<16x64xf32> to vector<16x64xbf16>
    %c0_102 = arith.constant 0 : index
    %c0_103 = arith.constant 0 : index
    %178 = vector.load %arg13[%c0_102, %c0_103] : memref<64x128xbf16, #tpu.memory_space<vmem>>, vector<64x128xbf16>
    %cst_104 = arith.constant dense<0.000000e+00> : vector<16x128xf32>
    %179 = tpu.matmul %177, %178, %cst_104 {dimension_numbers = #tpu.dot_dimension_numbers<[1], [0], [0], [1], [0, 0, 1, 1], [], []>} : vector<16x64xbf16>, vector<64x128xbf16>, vector<16x128xf32> -> vector<16x128xf32>
    %c0_105 = arith.constant 0 : index
    %c0_106 = arith.constant 0 : index
    %180 = vector.load %arg14[%c0_105, %c0_106] : memref<64x128xbf16, #tpu.memory_space<vmem>>, vector<64x128xbf16>
    %cst_107 = arith.constant dense<0.000000e+00> : vector<16x128xf32>
    %181 = tpu.matmul %177, %180, %cst_107 {dimension_numbers = #tpu.dot_dimension_numbers<[1], [0], [0], [1], [0, 0, 1, 1], [], []>} : vector<16x64xbf16>, vector<64x128xbf16>, vector<16x128xf32> -> vector<16x128xf32>
    %182 = arith.negf %179 : vector<16x128xf32>
    %183 = math.exp %182 : vector<16x128xf32>
    %cst_108 = arith.constant 1.000000e+00 : f32
    %184 = vector.broadcast %cst_108 : f32 to vector<16x128xf32>
    %185 = arith.addf %184, %183 : vector<16x128xf32>
    %186 = arith.divf %184, %185 : vector<16x128xf32>
    %187 = arith.mulf %179, %186 : vector<16x128xf32>
    %188 = arith.mulf %187, %181 : vector<16x128xf32>
    %189 = arith.truncf %188 : vector<16x128xf32> to vector<16x128xbf16>
    %c0_109 = arith.constant 0 : index
    %c0_110 = arith.constant 0 : index
    %190 = vector.load %arg15[%c0_109, %c0_110] : memref<128x64xbf16, #tpu.memory_space<vmem>>, vector<128x64xbf16>
    %cst_111 = arith.constant dense<0.000000e+00> : vector<16x64xf32>
    %191 = tpu.matmul %189, %190, %cst_111 {dimension_numbers = #tpu.dot_dimension_numbers<[1], [0], [0], [1], [0, 0, 1, 1], [], []>} : vector<16x128xbf16>, vector<128x64xbf16>, vector<16x64xf32> -> vector<16x64xf32>
    %192 = arith.addf %163, %191 : vector<16x64xf32>
    %c0_112 = arith.constant 0 : index
    %c0_113 = arith.constant 0 : index
    %193 = vector.load %arg16[%c0_112, %c0_113] : memref<16x64xf32, #tpu.memory_space<vmem>>, vector<16x64xf32>
    tpu.vector_store %arg16[%c0_112, %c0_113], %192 {strides = array<i32>} : memref<16x64xf32, #tpu.memory_space<vmem>>, vector<16x64xf32>,
    return
  }
  func.func @transform_0(%arg0: i32) -> (i32, i32) {
    %c0_i32 = arith.constant 0 : i32
    %c0_i32_0 = arith.constant 0 : i32
    %c0_i32_1 = arith.constant 0 : i32
    return %c0_i32, %c0_i32_0 : i32, i32
  }
  func.func @transform_1(%arg0: i32) -> (i32, i32) {
    %c0_i32 = arith.constant 0 : i32
    %c0_i32_0 = arith.constant 0 : i32
    %c0_i32_1 = arith.constant 0 : i32
    return %c0_i32, %c0_i32_0 : i32, i32
  }
  func.func @transform_2(%arg0: i32) -> (i32, i32) {
    %c0_i32 = arith.constant 0 : i32
    %c0_i32_0 = arith.constant 0 : i32
    %c0_i32_1 = arith.constant 0 : i32
    return %c0_i32, %c0_i32_0 : i32, i32
  }
  func.func @transform_3(%arg0: i32) -> (i32, i32) {
    %c0_i32 = arith.constant 0 : i32
    %c0_i32_0 = arith.constant 0 : i32
    %c0_i32_1 = arith.constant 0 : i32
    return %c0_i32, %c0_i32_0 : i32, i32
  }
  func.func @transform_4(%arg0: i32) -> (i32, i32) {
    %c0_i32 = arith.constant 0 : i32
    %c0_i32_0 = arith.constant 0 : i32
    %c0_i32_1 = arith.constant 0 : i32
    return %c0_i32, %c0_i32_0 : i32, i32
  }
  func.func @transform_5(%arg0: i32) -> (i32, i32, i32) {
    %c0_i32 = arith.constant 0 : i32
    %c0_i32_0 = arith.constant 0 : i32
    %c0_i32_1 = arith.constant 0 : i32
    %c0_i32_2 = arith.constant 0 : i32
    return %c0_i32, %c0_i32_0, %c0_i32_1 : i32, i32, i32
  }
  func.func @transform_6(%arg0: i32) -> (i32, i32, i32) {
    %c0_i32 = arith.constant 0 : i32
    %c0_i32_0 = arith.constant 0 : i32
    %c0_i32_1 = arith.constant 0 : i32
    %c0_i32_2 = arith.constant 0 : i32
    return %c0_i32, %c0_i32_0, %c0_i32_1 : i32, i32, i32
  }
  func.func @transform_7(%arg0: i32) -> (i32, i32, i32) {
    %c0_i32 = arith.constant 0 : i32
    %c0_i32_0 = arith.constant 0 : i32
    %c0_i32_1 = arith.constant 0 : i32
    %c0_i32_2 = arith.constant 0 : i32
    return %c0_i32, %c0_i32_0, %c0_i32_1 : i32, i32, i32
  }
  func.func @transform_8(%arg0: i32) -> (i32, i32, i32) {
    %c0_i32 = arith.constant 0 : i32
    %c0_i32_0 = arith.constant 0 : i32
    %c0_i32_1 = arith.constant 0 : i32
    %c0_i32_2 = arith.constant 0 : i32
    return %c0_i32, %c0_i32_0, %c0_i32_1 : i32, i32, i32
  }
  func.func @transform_9(%arg0: i32) -> (i32, i32, i32) {
    %c0_i32 = arith.constant 0 : i32
    %c0_i32_0 = arith.constant 0 : i32
    %c0_i32_1 = arith.constant 0 : i32
    %c0_i32_2 = arith.constant 0 : i32
    return %c0_i32, %c0_i32_0, %c0_i32_1 : i32, i32, i32
  }
  func.func @transform_10(%arg0: i32) -> (i32, i32, i32) {
    %c0_i32 = arith.constant 0 : i32
    %c0_i32_0 = arith.constant 0 : i32
    %c0_i32_1 = arith.constant 0 : i32
    %c0_i32_2 = arith.constant 0 : i32
    return %c0_i32, %c0_i32_0, %c0_i32_1 : i32, i32, i32
  }
  func.func @transform_11(%arg0: i32) -> (i32, i32) {
    %c0_i32 = arith.constant 0 : i32
    %c0_i32_0 = arith.constant 0 : i32
    %c0_i32_1 = arith.constant 0 : i32
    return %c0_i32, %c0_i32_0 : i32, i32
  }
  func.func @transform_12(%arg0: i32) -> (i32, i32) {
    %c0_i32 = arith.constant 0 : i32
    %c0_i32_0 = arith.constant 0 : i32
    %c0_i32_1 = arith.constant 0 : i32
    return %c0_i32, %c0_i32_0 : i32, i32
  }
  func.func @transform_13(%arg0: i32) -> (i32, i32) {
    %c0_i32 = arith.constant 0 : i32
    %c0_i32_0 = arith.constant 0 : i32
    %c0_i32_1 = arith.constant 0 : i32
    return %c0_i32, %c0_i32_0 : i32, i32
  }
  func.func @transform_14(%arg0: i32) -> (i32, i32) {
    %c0_i32 = arith.constant 0 : i32
    %c0_i32_0 = arith.constant 0 : i32
    %c0_i32_1 = arith.constant 0 : i32
    return %c0_i32, %c0_i32_0 : i32, i32
  }
  func.func @transform_15(%arg0: i32) -> (i32, i32) {
    %c0_i32 = arith.constant 0 : i32
    %c0_i32_0 = arith.constant 0 : i32
    %c0_i32_1 = arith.constant 0 : i32
    return %c0_i32, %c0_i32_0 : i32, i32
  }
}

</mosaic_0001>

<llo_original>
// kernel: tpu_custom_call.1
$region0: #{tpu_custom_call.1}
  #allocation0 [shape = 'u32[]', space=smem, size = 0x4, offset = 0x4, fixed_abs, tag = 'smem constant byte address 0x4 - core index']
  #allocation1 [shape = 'u32[144,128]{1,0:T(1,128)}', space=vmem, size = 0x12000, scoped, tag = 'internal scratch']
  %s0 = inlined_call_operand.vmem [shape: f32[16,64], index: 0, kind: input, shape index: {}]
  %s1 = inlined_call_operand.vmem [shape: f32[16,16], index: 1, kind: input, shape index: {}]
  %s2 = inlined_call_operand.vmem [shape: f32[16,16], index: 2, kind: input, shape index: {}]
  %s3 = inlined_call_operand.vmem [shape: f32[16,16], index: 3, kind: input, shape index: {}]
  %s4 = inlined_call_operand.vmem [shape: f32[1,64], index: 4, kind: input, shape index: {}]
  %s5 = inlined_call_operand.vmem [shape: bf16[4,64,16], index: 5, kind: input, shape index: {}]
  %s6 = inlined_call_operand.vmem [shape: bf16[4,64,16], index: 6, kind: input, shape index: {}]
  %s7 = inlined_call_operand.vmem [shape: bf16[2,64,16], index: 7, kind: input, shape index: {}]
  %s8 = inlined_call_operand.vmem [shape: bf16[2,64,16], index: 8, kind: input, shape index: {}]
  %s9 = inlined_call_operand.vmem [shape: bf16[2,64,16], index: 9, kind: input, shape index: {}]
  %s10 = inlined_call_operand.vmem [shape: bf16[4,16,64], index: 10, kind: input, shape index: {}]
  %s11 = inlined_call_operand.vmem [shape: f32[1,64], index: 11, kind: input, shape index: {}]
  %s12 = inlined_call_operand.vmem [shape: bf16[64,128], index: 12, kind: input, shape index: {}]
  %s13 = inlined_call_operand.vmem [shape: bf16[64,128], index: 13, kind: input, shape index: {}]
  %s14 = inlined_call_operand.vmem [shape: bf16[128,64], index: 14, kind: input, shape index: {}]
  %s15 = inlined_call_operand.hbm [shape: f32[16,64], index: 15, kind: output, shape index: {}]
  %s16 = sld [smem:[#allocation0]]
  $region70: #{tpu_custom_call.1} parent=0
    _
  %s18 = ssub.s32 1, %s16
  %s19 = scalar_select 0, %s18, %s16
  $region1: #{tpu_custom_call.1} parent=0
    #allocation2 [shape = 'u8[8192]{0}', space=vmem, size = 0x2000, scoped, tag = 'output window, operand 0, single buffered']
    #allocation3 [shape = 's32[1]{0}', space=sflag, size = 0x4, scoped, tag = 'scoped memory for tpu_custom_call.1']
    %20 = vsyncpa [#allocation3], 0
    // Predicated region
    $region2: #{tpu_custom_call.1} parent=1 // pred_check
      _
    $region3: #{tpu_custom_call.1} parent=1 // pred_check_branch
      %22 = sbr.rel (0) target = $region5
    $region4: #{tpu_custom_call.1} parent=1 // pred_region
      _
    $region5: #{tpu_custom_call.1} parent=1 // pred_fallthru
      _
    // Predicated region
    $region6: #{tpu_custom_call.1} parent=1 // pred_check
      _
    $region7: #{tpu_custom_call.1} parent=1 // pred_check_branch
      %24 = sbr.rel (0) target = $region9
    $region8: #{tpu_custom_call.1} parent=1 // pred_region
      _
    $region9: #{tpu_custom_call.1} parent=1 // pred_fallthru
      _
    // Predicated region
    $region10: #{tpu_custom_call.1} parent=1 // pred_check
      _
    $region11: #{tpu_custom_call.1} parent=1 // pred_check_branch
      %26 = sbr.rel (0) target = $region13
    $region12: #{tpu_custom_call.1} parent=1 // pred_region
      _
    $region13: #{tpu_custom_call.1} parent=1 // pred_fallthru
      _
    // Predicated region
    $region14: #{tpu_custom_call.1} parent=1 // pred_check
      _
    $region15: #{tpu_custom_call.1} parent=1 // pred_check_branch
      %28 = sbr.rel (0) target = $region17
    $region16: #{tpu_custom_call.1} parent=1 // pred_region
      _
    $region17: #{tpu_custom_call.1} parent=1 // pred_fallthru
      _
    // Predicated region
    $region18: #{tpu_custom_call.1} parent=1 // pred_check
      _
    $region19: #{tpu_custom_call.1} parent=1 // pred_check_branch
      %30 = sbr.rel (0) target = $region21
    $region20: #{tpu_custom_call.1} parent=1 // pred_region
      _
    $region21: #{tpu_custom_call.1} parent=1 // pred_fallthru
      _
    // Predicated region
    $region22: #{tpu_custom_call.1} parent=1 // pred_check
      _
    $region23: #{tpu_custom_call.1} parent=1 // pred_check_branch
      %32 = sbr.rel (0) target = $region25
    $region24: #{tpu_custom_call.1} parent=1 // pred_region
      _
    $region25: #{tpu_custom_call.1} parent=1 // pred_fallthru
      _
    // Predicated region
    $region26: #{tpu_custom_call.1} parent=1 // pred_check
      _
    $region27: #{tpu_custom_call.1} parent=1 // pred_check_branch
      %34 = sbr.rel (0) target = $region29
    $region28: #{tpu_custom_call.1} parent=1 // pred_region
      _
    $region29: #{tpu_custom_call.1} parent=1 // pred_fallthru
      _
    // Predicated region
    $region30: #{tpu_custom_call.1} parent=1 // pred_check
      _
    $region31: #{tpu_custom_call.1} parent=1 // pred_check_branch
      %36 = sbr.rel (0) target = $region33
    $region32: #{tpu_custom_call.1} parent=1 // pred_region
      _
    $region33: #{tpu_custom_call.1} parent=1 // pred_fallthru
      _
    // Predicated region
    $region34: #{tpu_custom_call.1} parent=1 // pred_check
      _
    $region35: #{tpu_custom_call.1} parent=1 // pred_check_branch
      %38 = sbr.rel (0) target = $region37
    $region36: #{tpu_custom_call.1} parent=1 // pred_region
      _
    $region37: #{tpu_custom_call.1} parent=1 // pred_fallthru
      _
    // Predicated region
    $region38: #{tpu_custom_call.1} parent=1 // pred_check
      _
    $region39: #{tpu_custom_call.1} parent=1 // pred_check_branch
      %40 = sbr.rel (0) target = $region41
    $region40: #{tpu_custom_call.1} parent=1 // pred_region
      _
    $region41: #{tpu_custom_call.1} parent=1 // pred_fallthru
      _
    // Predicated region
    $region42: #{tpu_custom_call.1} parent=1 // pred_check
      _
    $region43: #{tpu_custom_call.1} parent=1 // pred_check_branch
      %42 = sbr.rel (0) target = $region45
    $region44: #{tpu_custom_call.1} parent=1 // pred_region
      _
    $region45: #{tpu_custom_call.1} parent=1 // pred_fallthru
      _
    // Predicated region
    $region46: #{tpu_custom_call.1} parent=1 // pred_check
      _
    $region47: #{tpu_custom_call.1} parent=1 // pred_check_branch
      %44 = sbr.rel (0) target = $region49
    $region48: #{tpu_custom_call.1} parent=1 // pred_region
      _
    $region49: #{tpu_custom_call.1} parent=1 // pred_fallthru
      _
    // Predicated region
    $region50: #{tpu_custom_call.1} parent=1 // pred_check
      _
    $region51: #{tpu_custom_call.1} parent=1 // pred_check_branch
      %46 = sbr.rel (0) target = $region53
    $region52: #{tpu_custom_call.1} parent=1 // pred_region
      _
    $region53: #{tpu_custom_call.1} parent=1 // pred_fallthru
      _
    // Predicated region
    $region54: #{tpu_custom_call.1} parent=1 // pred_check
      _
    $region55: #{tpu_custom_call.1} parent=1 // pred_check_branch
      %48 = sbr.rel (0) target = $region57
    $region56: #{tpu_custom_call.1} parent=1 // pred_region
      _
    $region57: #{tpu_custom_call.1} parent=1 // pred_fallthru
      _
    // Predicated region
    $region58: #{tpu_custom_call.1} parent=1 // pred_check
      _
    $region59: #{tpu_custom_call.1} parent=1 // pred_check_branch
      %50 = sbr.rel (0) target = $region61
    $region60: #{tpu_custom_call.1} parent=1 // pred_region
      _
    $region61: #{tpu_custom_call.1} parent=1 // pred_fallthru
      _
    %v52 = vld [vmem:[%s0] sm:$0xff]
    %v53 = vld [vmem:[%s0 + $0x8] sm:$0xff]
    %v54 = vmul.f32 %v52, %v52
    %v55 = vmul.f32 %v53, %v53
    %vm56 = vcmask 523264
    %v57 = vsel %vm56, %v54, 0.0
    %58 = vadd.xlane.f32.xlu0 %v57
    %v59 = vpop.xlane.xlu0 %58
    %v60 = vsel %vm56, %v55, 0.0
    %61 = vadd.xlane.f32.xlu0 %v60
    %v62 = vpop.xlane.xlu0 %61
    %v63 = vrcp.pop 64.0
    %v64 = vmul.f32 %v59, %v63
    %v65 = vmul.f32 %v62, %v63
    %v66 = vadd.f32 %v64, 1e-06
    %v67 = vadd.f32 %v65, 1e-06
    %v68 = vrsqrt.pop %v66
    %v69 = vrsqrt.pop %v67
    %v70 = vmul.f32 %v52, %v68
    %v71 = vmul.f32 %v53, %v69
    %v72 = vld [vmem:[%s4] sm:$0x1]
    %v74 = vlaneseq
    %v75 = vshrl.u32 %v74, 7
    %v76 = vsub.s32 0, %v75
    %v77 = vrot.slane %v72, %v76
    %v79 = vmul.f32 %v70, %v77
    %v80 = vmul.f32 %v71, %v77
    %v81 = vpack.c.bf16 %v80, %v79
    %v82 = vld [vmem:[%s2] sm:$0xff]
    %v83 = vld [vmem:[%s2 + $0x8] sm:$0xff]
    %v84 = vld [vmem:[%s3] sm:$0xff]
    %v85 = vld [vmem:[%s3 + $0x8] sm:$0xff]
    %v86 = vld [vmem:[%s1] sm:$0xff]
    %v87 = vld [vmem:[%s1 + $0x8] sm:$0xff]
    %v88 = vld [vmem:[%s7] sm:$0xf]
    %v89 = vld [vmem:[%s7 + $0x4] sm:$0xf]
    %v90 = vld [vmem:[%s7 + $0x8] sm:$0xf]
    %v91 = vld [vmem:[%s7 + $0xc] sm:$0xf]
    %v92 = vld [vmem:[%s7 + $0x10] sm:$0xf]
    %v93 = vld [vmem:[%s7 + $0x14] sm:$0xf]
    %v94 = vld [vmem:[%s7 + $0x18] sm:$0xf]
    %v95 = vld [vmem:[%s7 + $0x1c] sm:$0xf]
    %v104 = vunpack.c.l.b16 %v88
    %v105 = vunpack.c.l.b16 %v89
    %v106 = vunpack.c.l.b16 %v90
    %v107 = vunpack.c.l.b16 %v91
    %v108 = vunpack.c.l.b16 %v92
    %v109 = vunpack.c.l.b16 %v93
    %v110 = vunpack.c.l.b16 %v94
    %v111 = vunpack.c.l.b16 %v95
    %v112 = vpack.c.b16 %v105, %v104
    %v113 = vpack.c.b16 %v107, %v106
    %v114 = vpack.c.b16 %v109, %v108
    %v115 = vpack.c.b16 %v111, %v110
    %v121 = vsel %vm56, %v81, 0
    %123 = vmatprep.subr.bf16.mxu0 0
    %124 = vmatpush1.bf16.msra.mxu0 %v112
    %125 = vmatprep.subr.bf16.mxu0 0
    %126 = vmatpush1.bf16.msra.mxu0 %v113
    %127 = vmatprep.subr.bf16.mxu0 0
    %128 = vmatpush1.bf16.msra.mxu0 %v114
    %129 = vmatprep.subr.bf16.mxu0 0
    %130 = vmatpush1.bf16.msra.mxu0 %v115
    %131 = vmatprep.subr.bf16.mxu0 0
    %132 = vmatpush1.bf16.msra.mxu0 0
    %133 = vmatprep.subr.bf16.mxu0 0
    %134 = vmatpush1.bf16.msra.mxu0 0
    %135 = vmatprep.subr.bf16.mxu0 0
    %136 = vmatpush1.bf16.msra.mxu0 0
    %137 = vmatprep.subr.bf16.mxu0 0
    %138 = vmatpush1.bf16.msra.mxu0 0
    %139 = vmatprep.subr.bf16.mxu0 0
    %140 = vmatpush1.bf16.msra.mxu0 0
    %141 = vmatprep.subr.bf16.mxu0 0
    %142 = vmatpush1.bf16.msra.mxu0 0
    %143 = vmatprep.subr.bf16.mxu0 0
    %144 = vmatpush1.bf16.msra.mxu0 0
    %145 = vmatprep.subr.bf16.mxu0 0
    %146 = vmatpush1.bf16.msra.mxu0 0
    %147 = vmatprep.subr.bf16.mxu0 0
    %148 = vmatpush1.bf16.msra.mxu0 0
    %149 = vmatprep.subr.bf16.mxu0 0
    %150 = vmatpush1.bf16.msra.mxu0 0
    %151 = vmatprep.subr.bf16.mxu0 0
    %152 = vmatpush1.bf16.msra.mxu0 0
    %153 = vmatprep.subr.bf16.mxu0 0
    %154 = vmatpush1.bf16.msra.mxu0 0
    %155 = vmatprep.mubr.bf16.mxu0 0
    %156 = vmatmul.mubr.bf16.gmra.mrb[0].mxu0 %v121
    %v157 = vpop.f32.mrb[0].mxu0
    %v158 = vadd.f32 0.0, %v157
    %v159 = vpop.f32.mrb[0].mxu0
    %v160 = vpop.f32.mrb[0].mxu0
    %v161 = vadd.f32 0.0, %v160
    %v162 = vpop.f32.mrb[0].mxu0
    %163 = vdwg.mxu0
    %v164 = vld [vmem:[%s8] sm:$0xf]
    %v165 = vld [vmem:[%s8 + $0x4] sm:$0xf]
    %v166 = vld [vmem:[%s8 + $0x8] sm:$0xf]
    %v167 = vld [vmem:[%s8 + $0xc] sm:$0xf]
    %v168 = vld [vmem:[%s8 + $0x10] sm:$0xf]
    %v169 = vld [vmem:[%s8 + $0x14] sm:$0xf]
    %v170 = vld [vmem:[%s8 + $0x18] sm:$0xf]
    %v171 = vld [vmem:[%s8 + $0x1c] sm:$0xf]
    %v180 = vunpack.c.l.b16 %v164
    %v181 = vunpack.c.l.b16 %v165
    %v182 = vunpack.c.l.b16 %v166
    %v183 = vunpack.c.l.b16 %v167
    %v184 = vunpack.c.l.b16 %v168
    %v185 = vunpack.c.l.b16 %v169
    %v186 = vunpack.c.l.b16 %v170
    %v187 = vunpack.c.l.b16 %v171
    %v188 = vpack.c.b16 %v181, %v180
    %v189 = vpack.c.b16 %v183, %v182
    %v190 = vpack.c.b16 %v185, %v184
    %v191 = vpack.c.b16 %v187, %v186
    %196 = vmatprep.subr.bf16.mxu0 0
    %197 = vmatpush1.bf16.msra.mxu0 %v188
    %198 = vmatprep.subr.bf16.mxu0 0
    %199 = vmatpush1.bf16.msra.mxu0 %v189
    %200 = vmatprep.subr.bf16.mxu0 0
    %201 = vmatpush1.bf16.msra.mxu0 %v190
    %202 = vmatprep.subr.bf16.mxu0 0
    %203 = vmatpush1.bf16.msra.mxu0 %v191
    %204 = vmatprep.subr.bf16.mxu0 0
    %205 = vmatpush1.bf16.msra.mxu0 0
    %206 = vmatprep.subr.bf16.mxu0 0
    %207 = vmatpush1.bf16.msra.mxu0 0
    %208 = vmatprep.subr.bf16.mxu0 0
    %209 = vmatpush1.bf16.msra.mxu0 0
    %210 = vmatprep.subr.bf16.mxu0 0
    %211 = vmatpush1.bf16.msra.mxu0 0
    %212 = vmatprep.subr.bf16.mxu0 0
    %213 = vmatpush1.bf16.msra.mxu0 0
    %214 = vmatprep.subr.bf16.mxu0 0
    %215 = vmatpush1.bf16.msra.mxu0 0
    %216 = vmatprep.subr.bf16.mxu0 0
    %217 = vmatpush1.bf16.msra.mxu0 0
    %218 = vmatprep.subr.bf16.mxu0 0
    %219 = vmatpush1.bf16.msra.mxu0 0
    %220 = vmatprep.subr.bf16.mxu0 0
    %221 = vmatpush1.bf16.msra.mxu0 0
    %222 = vmatprep.subr.bf16.mxu0 0
    %223 = vmatpush1.bf16.msra.mxu0 0
    %224 = vmatprep.subr.bf16.mxu0 0
    %225 = vmatpush1.bf16.msra.mxu0 0
    %226 = vmatprep.subr.bf16.mxu0 0
    %227 = vmatpush1.bf16.msra.mxu0 0
    %228 = vmatprep.mubr.bf16.mxu0 0
    %229 = vmatmul.mubr.bf16.gmra.mrb[0].mxu0 %v121
    %v230 = vpop.f32.mrb[0].mxu0
    %v231 = vadd.f32 0.0, %v230
    %v232 = vpop.f32.mrb[0].mxu0
    %v233 = vpop.f32.mrb[0].mxu0
    %v234 = vadd.f32 0.0, %v233
    %v235 = vpop.f32.mrb[0].mxu0
    %236 = vdwg.mxu0
    %v237 = vmul.f32 %v158, %v82
    %v238 = vmul.f32 %v161, %v83
    %v239 = vmul.f32 %v231, %v84
    %v240 = vmul.f32 %v234, %v85
    %v241 = vadd.f32 %v237, %v239
    %v242 = vadd.f32 %v238, %v240
    %v243 = vpack.c.bf16 %v242, %v241
    %v244 = vld [vmem:[%s9] sm:$0xf]
    %v245 = vld [vmem:[%s9 + $0x4] sm:$0xf]
    %v246 = vld [vmem:[%s9 + $0x8] sm:$0xf]
    %v247 = vld [vmem:[%s9 + $0xc] sm:$0xf]
    %v248 = vld [vmem:[%s9 + $0x10] sm:$0xf]
    %v249 = vld [vmem:[%s9 + $0x14] sm:$0xf]
    %v250 = vld [vmem:[%s9 + $0x18] sm:$0xf]
    %v251 = vld [vmem:[%s9 + $0x1c] sm:$0xf]
    %v260 = vunpack.c.l.b16 %v244
    %v261 = vunpack.c.l.b16 %v245
    %v262 = vunpack.c.l.b16 %v246
    %v263 = vunpack.c.l.b16 %v247
    %v264 = vunpack.c.l.b16 %v248
    %v265 = vunpack.c.l.b16 %v249
    %v266 = vunpack.c.l.b16 %v250
    %v267 = vunpack.c.l.b16 %v251
    %v268 = vpack.c.b16 %v261, %v260
    %v269 = vpack.c.b16 %v263, %v262
    %v270 = vpack.c.b16 %v265, %v264
    %v271 = vpack.c.b16 %v267, %v266
    %276 = vmatprep.subr.bf16.mxu0 0
    %277 = vmatpush1.bf16.msra.mxu0 %v268
    %278 = vmatprep.subr.bf16.mxu0 0
    %279 = vmatpush1.bf16.msra.mxu0 %v269
    %280 = vmatprep.subr.bf16.mxu0 0
    %281 = vmatpush1.bf16.msra.mxu0 %v270
    %282 = vmatprep.subr.bf16.mxu0 0
    %283 = vmatpush1.bf16.msra.mxu0 %v271
    %284 = vmatprep.subr.bf16.mxu0 0
    %285 = vmatpush1.bf16.msra.mxu0 0
    %286 = vmatprep.subr.bf16.mxu0 0
    %287 = vmatpush1.bf16.msra.mxu0 0
    %288 = vmatprep.subr.bf16.mxu0 0
    %289 = vmatpush1.bf16.msra.mxu0 0
    %290 = vmatprep.subr.bf16.mxu0 0
    %291 = vmatpush1.bf16.msra.mxu0 0
    %292 = vmatprep.subr.bf16.mxu0 0
    %293 = vmatpush1.bf16.msra.mxu0 0
    %294 = vmatprep.subr.bf16.mxu0 0
    %295 = vmatpush1.bf16.msra.mxu0 0
    %296 = vmatprep.subr.bf16.mxu0 0
    %297 = vmatpush1.bf16.msra.mxu0 0
    %298 = vmatprep.subr.bf16.mxu0 0
    %299 = vmatpush1.bf16.msra.mxu0 0
    %300 = vmatprep.subr.bf16.mxu0 0
    %301 = vmatpush1.bf16.msra.mxu0 0
    %302 = vmatprep.subr.bf16.mxu0 0
    %303 = vmatpush1.bf16.msra.mxu0 0
    %304 = vmatprep.subr.bf16.mxu0 0
    %305 = vmatpush1.bf16.msra.mxu0 0
    %306 = vmatprep.subr.bf16.mxu0 0
    %307 = vmatpush1.bf16.msra.mxu0 0
    %308 = vmatprep.mubr.bf16.mxu0 0
    %309 = vmatmul.mubr.bf16.gmra.mrb[0].mxu0 %v121
    %v310 = vpop.f32.mrb[0].mxu0
    %v311 = vadd.f32 0.0, %v310
    %v312 = vpop.f32.mrb[0].mxu0
    %v313 = vpop.f32.mrb[0].mxu0
    %v314 = vadd.f32 0.0, %v313
    %v315 = vpop.f32.mrb[0].mxu0
    %316 = vdwg.mxu0
    %v317 = vpack.c.bf16 %v314, %v311
    %v318 = vld [vmem:[%s5] sm:$0xf]
    %v319 = vld [vmem:[%s5 + $0x4] sm:$0xf]
    %v320 = vld [vmem:[%s5 + $0x8] sm:$0xf]
    %v321 = vld [vmem:[%s5 + $0xc] sm:$0xf]
    %v322 = vld [vmem:[%s5 + $0x10] sm:$0xf]
    %v323 = vld [vmem:[%s5 + $0x14] sm:$0xf]
    %v324 = vld [vmem:[%s5 + $0x18] sm:$0xf]
    %v325 = vld [vmem:[%s5 + $0x1c] sm:$0xf]
    %v334 = vunpack.c.l.b16 %v318
    %v335 = vunpack.c.l.b16 %v319
    %v336 = vunpack.c.l.b16 %v320
    %v337 = vunpack.c.l.b16 %v321
    %v338 = vunpack.c.l.b16 %v322
    %v339 = vunpack.c.l.b16 %v323
    %v340 = vunpack.c.l.b16 %v324
    %v341 = vunpack.c.l.b16 %v325
    %v342 = vpack.c.b16 %v335, %v334
    %v343 = vpack.c.b16 %v337, %v336
    %v344 = vpack.c.b16 %v339, %v338
    %v345 = vpack.c.b16 %v341, %v340
    %350 = vmatprep.subr.bf16.mxu0 0
    %351 = vmatpush1.bf16.msra.mxu0 %v342
    %352 = vmatprep.subr.bf16.mxu0 0
    %353 = vmatpush1.bf16.msra.mxu0 %v343
    %354 = vmatprep.subr.bf16.mxu0 0
    %355 = vmatpush1.bf16.msra.mxu0 %v344
    %356 = vmatprep.subr.bf16.mxu0 0
    %357 = vmatpush1.bf16.msra.mxu0 %v345
    %358 = vmatprep.subr.bf16.mxu0 0
    %359 = vmatpush1.bf16.msra.mxu0 0
    %360 = vmatprep.subr.bf16.mxu0 0
    %361 = vmatpush1.bf16.msra.mxu0 0
    %362 = vmatprep.subr.bf16.mxu0 0
    %363 = vmatpush1.bf16.msra.mxu0 0
    %364 = vmatprep.subr.bf16.mxu0 0
    %365 = vmatpush1.bf16.msra.mxu0 0
    %366 = vmatprep.subr.bf16.mxu0 0
    %367 = vmatpush1.bf16.msra.mxu0 0
    %368 = vmatprep.subr.bf16.mxu0 0
    %369 = vmatpush1.bf16.msra.mxu0 0
    %370 = vmatprep.subr.bf16.mxu0 0
    %371 = vmatpush1.bf16.msra.mxu0 0
    %372 = vmatprep.subr.bf16.mxu0 0
    %373 = vmatpush1.bf16.msra.mxu0 0
    %374 = vmatprep.subr.bf16.mxu0 0
    %375 = vmatpush1.bf16.msra.mxu0 0
    %376 = vmatprep.subr.bf16.mxu0 0
    %377 = vmatpush1.bf16.msra.mxu0 0
    %378 = vmatprep.subr.bf16.mxu0 0
    %379 = vmatpush1.bf16.msra.mxu0 0
    %380 = vmatprep.subr.bf16.mxu0 0
    %381 = vmatpush1.bf16.msra.mxu0 0
    %382 = vmatprep.mubr.bf16.mxu0 0
    %383 = vmatmul.mubr.bf16.gmra.mrb[0].mxu0 %v121
    %v384 = vpop.f32.mrb[0].mxu0
    %v385 = vadd.f32 0.0, %v384
    %v386 = vpop.f32.mrb[0].mxu0
    %v387 = vpop.f32.mrb[0].mxu0
    %v388 = vadd.f32 0.0, %v387
    %v389 = vpop.f32.mrb[0].mxu0
    %390 = vdwg.mxu0
    %v391 = vld [vmem:[%s6] sm:$0xf]
    %v392 = vld [vmem:[%s6 + $0x4] sm:$0xf]
    %v393 = vld [vmem:[%s6 + $0x8] sm:$0xf]
    %v394 = vld [vmem:[%s6 + $0xc] sm:$0xf]
    %v395 = vld [vmem:[%s6 + $0x10] sm:$0xf]
    %v396 = vld [vmem:[%s6 + $0x14] sm:$0xf]
    %v397 = vld [vmem:[%s6 + $0x18] sm:$0xf]
    %v398 = vld [vmem:[%s6 + $0x1c] sm:$0xf]
    %v407 = vunpack.c.l.b16 %v391
    %v408 = vunpack.c.l.b16 %v392
    %v409 = vunpack.c.l.b16 %v393
    %v410 = vunpack.c.l.b16 %v394
    %v411 = vunpack.c.l.b16 %v395
    %v412 = vunpack.c.l.b16 %v396
    %v413 = vunpack.c.l.b16 %v397
    %v414 = vunpack.c.l.b16 %v398
    %v415 = vpack.c.b16 %v408, %v407
    %v416 = vpack.c.b16 %v410, %v409
    %v417 = vpack.c.b16 %v412, %v411
    %v418 = vpack.c.b16 %v414, %v413
    %423 = vmatprep.subr.bf16.mxu0 0
    %424 = vmatpush1.bf16.msra.mxu0 %v415
    %425 = vmatprep.subr.bf16.mxu0 0
    %426 = vmatpush1.bf16.msra.mxu0 %v416
    %427 = vmatprep.subr.bf16.mxu0 0
    %428 = vmatpush1.bf16.msra.mxu0 %v417
    %429 = vmatprep.subr.bf16.mxu0 0
    %430 = vmatpush1.bf16.msra.mxu0 %v418
    %431 = vmatprep.subr.bf16.mxu0 0
    %432 = vmatpush1.bf16.msra.mxu0 0
    %433 = vmatprep.subr.bf16.mxu0 0
    %434 = vmatpush1.bf16.msra.mxu0 0
    %435 = vmatprep.subr.bf16.mxu0 0
    %436 = vmatpush1.bf16.msra.mxu0 0
    %437 = vmatprep.subr.bf16.mxu0 0
    %438 = vmatpush1.bf16.msra.mxu0 0
    %439 = vmatprep.subr.bf16.mxu0 0
    %440 = vmatpush1.bf16.msra.mxu0 0
    %441 = vmatprep.subr.bf16.mxu0 0
    %442 = vmatpush1.bf16.msra.mxu0 0
    %443 = vmatprep.subr.bf16.mxu0 0
    %444 = vmatpush1.bf16.msra.mxu0 0
    %445 = vmatprep.subr.bf16.mxu0 0
    %446 = vmatpush1.bf16.msra.mxu0 0
    %447 = vmatprep.subr.bf16.mxu0 0
    %448 = vmatpush1.bf16.msra.mxu0 0
    %449 = vmatprep.subr.bf16.mxu0 0
    %450 = vmatpush1.bf16.msra.mxu0 0
    %451 = vmatprep.subr.bf16.mxu0 0
    %452 = vmatpush1.bf16.msra.mxu0 0
    %453 = vmatprep.subr.bf16.mxu0 0
    %454 = vmatpush1.bf16.msra.mxu0 0
    %455 = vmatprep.mubr.bf16.mxu0 0
    %456 = vmatmul.mubr.bf16.gmra.mrb[0].mxu0 %v121
    %v457 = vpop.f32.mrb[0].mxu0
    %v458 = vadd.f32 0.0, %v457
    %v459 = vpop.f32.mrb[0].mxu0
    %v460 = vpop.f32.mrb[0].mxu0
    %v461 = vadd.f32 0.0, %v460
    %v462 = vpop.f32.mrb[0].mxu0
    %463 = vdwg.mxu0
    %v464 = vmul.f32 %v385, %v82
    %v465 = vmul.f32 %v388, %v83
    %v466 = vmul.f32 %v458, %v84
    %v467 = vmul.f32 %v461, %v85
    %v468 = vadd.f32 %v464, %v466
    %v469 = vadd.f32 %v465, %v467
    %v470 = vpack.c.bf16 %v469, %v468
    %vm471 = vcmask 130048
    %v473 = vsel %vm471, %v470, 0
    %v476 = vsel %vm471, %v243, 0
    %478 = vmatprep.subr.bf16.mxu0 0
    %479 = vmatpush1.bf16.xpose.msra.mxu0 %v476
    %480 = vmatprep.subr.bf16.mxu0 0
    %481 = vmatpush1.bf16.xpose.msra.mxu0 0
    %482 = vmatprep.subr.bf16.mxu0 0
    %483 = vmatpush1.bf16.xpose.msra.mxu0 0
    %484 = vmatprep.subr.bf16.mxu0 0
    %485 = vmatpush1.bf16.xpose.msra.mxu0 0
    %486 = vmatprep.subr.bf16.mxu0 0
    %487 = vmatpush1.bf16.xpose.msra.mxu0 0
    %488 = vmatprep.subr.bf16.mxu0 0
    %489 = vmatpush1.bf16.xpose.msra.mxu0 0
    %490 = vmatprep.subr.bf16.mxu0 0
    %491 = vmatpush1.bf16.xpose.msra.mxu0 0
    %492 = vmatprep.subr.bf16.mxu0 0
    %493 = vmatpush1.bf16.xpose.msra.mxu0 0
    %494 = vmatprep.subr.bf16.mxu0 0
    %495 = vmatpush1.bf16.xpose.msra.mxu0 0
    %496 = vmatprep.subr.bf16.mxu0 0
    %497 = vmatpush1.bf16.xpose.msra.mxu0 0
    %498 = vmatprep.subr.bf16.mxu0 0
    %499 = vmatpush1.bf16.xpose.msra.mxu0 0
    %500 = vmatprep.subr.bf16.mxu0 0
    %501 = vmatpush1.bf16.xpose.msra.mxu0 0
    %502 = vmatprep.subr.bf16.mxu0 0
    %503 = vmatpush1.bf16.xpose.msra.mxu0 0
    %504 = vmatprep.subr.bf16.mxu0 0
    %505 = vmatpush1.bf16.xpose.msra.mxu0 0
    %506 = vmatprep.subr.bf16.mxu0 0
    %507 = vmatpush1.bf16.xpose.msra.mxu0 0
    %508 = vmatprep.subr.bf16.mxu0 0
    %509 = vmatpush1.bf16.xpose.msra.mxu0 0
    %510 = vmatprep.mubr.bf16.mxu0 0
    %511 = vmatmul.mubr.bf16.gmra.mrb[0].mxu0 %v473
    %v512 = vpop.f32.mrb[0].mxu0
    %v513 = vadd.f32 %v86, %v512
    %v514 = vpop.f32.mrb[0].mxu0
    %v515 = vpop.f32.mrb[0].mxu0
    %v516 = vadd.f32 %v87, %v515
    %v517 = vpop.f32.mrb[0].mxu0
    %518 = vdwg.mxu0
    %v519 = vsel %vm471, %v513, -inf
    %520 = vmax.xlane.f32.xlu0 %v519
    %v521 = vpop.xlane.xlu0 %520
    %v522 = vsel %vm471, %v516, -inf
    %523 = vmax.xlane.f32.xlu0 %v522
    %v524 = vpop.xlane.xlu0 %523
    %v525 = vsub.f32 %v513, %v521
    %v526 = vsub.f32 %v516, %v524
    %v527 = vmul.f32 %v525, 1.442695
    %v528 = vpow.pop %v527
    %v529 = vmul.f32 %v526, 1.442695
    %v530 = vpow.pop %v529
    %v531 = vsel %vm471, %v528, 0.0
    %532 = vadd.xlane.f32.xlu0 %v531
    %v533 = vpop.xlane.xlu0 %532
    %v534 = vsel %vm471, %v530, 0.0
    %535 = vadd.xlane.f32.xlu0 %v534
    %v536 = vpop.xlane.xlu0 %535
    %v537 = vrcp.pop %v533
    %v538 = vrcp.pop %v536
    %v539 = vmul.f32 %v528, %v537
    %v540 = vmul.f32 %v530, %v538
    %v541 = vpack.c.bf16 %v540, %v539
    %v543 = vsel %vm471, %v541, 0
    %545 = vmatprep.subr.bf16.mxu0 0
    %546 = vmatpush1.bf16.msra.mxu0 %v317
    %547 = vmatprep.subr.bf16.mxu0 0
    %548 = vmatpush1.bf16.msra.mxu0 0
    %549 = vmatprep.subr.bf16.mxu0 0
    %550 = vmatpush1.bf16.msra.mxu0 0
    %551 = vmatprep.subr.bf16.mxu0 0
    %552 = vmatpush1.bf16.msra.mxu0 0
    %553 = vmatprep.subr.bf16.mxu0 0
    %554 = vmatpush1.bf16.msra.mxu0 0
    %555 = vmatprep.subr.bf16.mxu0 0
    %556 = vmatpush1.bf16.msra.mxu0 0
    %557 = vmatprep.subr.bf16.mxu0 0
    %558 = vmatpush1.bf16.msra.mxu0 0
    %559 = vmatprep.subr.bf16.mxu0 0
    %560 = vmatpush1.bf16.msra.mxu0 0
    %561 = vmatprep.subr.bf16.mxu0 0
    %562 = vmatpush1.bf16.msra.mxu0 0
    %563 = vmatprep.subr.bf16.mxu0 0
    %564 = vmatpush1.bf16.msra.mxu0 0
    %565 = vmatprep.subr.bf16.mxu0 0
    %566 = vmatpush1.bf16.msra.mxu0 0
    %567 = vmatprep.subr.bf16.mxu0 0
    %568 = vmatpush1.bf16.msra.mxu0 0
    %569 = vmatprep.subr.bf16.mxu0 0
    %570 = vmatpush1.bf16.msra.mxu0 0
    %571 = vmatprep.subr.bf16.mxu0 0
    %572 = vmatpush1.bf16.msra.mxu0 0
    %573 = vmatprep.subr.bf16.mxu0 0
    %574 = vmatpush1.bf16.msra.mxu0 0
    %575 = vmatprep.subr.bf16.mxu0 0
    %576 = vmatpush1.bf16.msra.mxu0 0
    %577 = vmatprep.mubr.bf16.mxu0 0
    %578 = vmatmul.mubr.bf16.gmra.mrb[0].mxu0 %v543
    %v579 = vpop.f32.mrb[0].mxu0
    %v580 = vadd.f32 0.0, %v579
    %v581 = vpop.f32.mrb[0].mxu0
    %v582 = vpop.f32.mrb[0].mxu0
    %v583 = vadd.f32 0.0, %v582
    %v584 = vpop.f32.mrb[0].mxu0
    %585 = vdwg.mxu0
    %v586 = vpack.c.bf16 %v583, %v580
    %v587 = vld [vmem:[%s10] sm:$0xf]
    %v588 = vld [vmem:[%s10 + $0x4] sm:$0xf]
    %s589 = scalar_lea.vmem %s5, 32
    %v590 = vld [vmem:[%s589] sm:$0xf]
    %v591 = vld [vmem:[%s589 + $0x4] sm:$0xf]
    %v592 = vld [vmem:[%s589 + $0x8] sm:$0xf]
    %v593 = vld [vmem:[%s589 + $0xc] sm:$0xf]
    %v594 = vld [vmem:[%s589 + $0x10] sm:$0xf]
    %v595 = vld [vmem:[%s589 + $0x14] sm:$0xf]
    %v596 = vld [vmem:[%s589 + $0x18] sm:$0xf]
    %v597 = vld [vmem:[%s589 + $0x1c] sm:$0xf]
    %v606 = vunpack.c.l.b16 %v590
    %v607 = vunpack.c.l.b16 %v591
    %v608 = vunpack.c.l.b16 %v592
    %v609 = vunpack.c.l.b16 %v593
    %v610 = vunpack.c.l.b16 %v594
    %v611 = vunpack.c.l.b16 %v595
    %v612 = vunpack.c.l.b16 %v596
    %v613 = vunpack.c.l.b16 %v597
    %v614 = vpack.c.b16 %v607, %v606
    %v615 = vpack.c.b16 %v609, %v608
    %v616 = vpack.c.b16 %v611, %v610
    %v617 = vpack.c.b16 %v613, %v612
    %622 = vmatprep.subr.bf16.mxu0 0
    %623 = vmatpush1.bf16.msra.mxu0 %v614
    %624 = vmatprep.subr.bf16.mxu0 0
    %625 = vmatpush1.bf16.msra.mxu0 %v615
    %626 = vmatprep.subr.bf16.mxu0 0
    %627 = vmatpush1.bf16.msra.mxu0 %v616
    %628 = vmatprep.subr.bf16.mxu0 0
    %629 = vmatpush1.bf16.msra.mxu0 %v617
    %630 = vmatprep.subr.bf16.mxu0 0
    %631 = vmatpush1.bf16.msra.mxu0 0
    %632 = vmatprep.subr.bf16.mxu0 0
    %633 = vmatpush1.bf16.msra.mxu0 0
    %634 = vmatprep.subr.bf16.mxu0 0
    %635 = vmatpush1.bf16.msra.mxu0 0
    %636 = vmatprep.subr.bf16.mxu0 0
    %637 = vmatpush1.bf16.msra.mxu0 0
    %638 = vmatprep.subr.bf16.mxu0 0
    %639 = vmatpush1.bf16.msra.mxu0 0
    %640 = vmatprep.subr.bf16.mxu0 0
    %641 = vmatpush1.bf16.msra.mxu0 0
    %642 = vmatprep.subr.bf16.mxu0 0
    %643 = vmatpush1.bf16.msra.mxu0 0
    %644 = vmatprep.subr.bf16.mxu0 0
    %645 = vmatpush1.bf16.msra.mxu0 0
    %646 = vmatprep.subr.bf16.mxu0 0
    %647 = vmatpush1.bf16.msra.mxu0 0
    %648 = vmatprep.subr.bf16.mxu0 0
    %649 = vmatpush1.bf16.msra.mxu0 0
    %650 = vmatprep.subr.bf16.mxu0 0
    %651 = vmatpush1.bf16.msra.mxu0 0
    %652 = vmatprep.subr.bf16.mxu0 0
    %653 = vmatpush1.bf16.msra.mxu0 0
    %654 = vmatprep.mubr.bf16.mxu0 0
    %655 = vmatmul.mubr.bf16.gmra.mrb[0].mxu0 %v121
    %v656 = vpop.f32.mrb[0].mxu0
    %v657 = vadd.f32 0.0, %v656
    %v658 = vpop.f32.mrb[0].mxu0
    %v659 = vpop.f32.mrb[0].mxu0
    %v660 = vadd.f32 0.0, %v659
    %v661 = vpop.f32.mrb[0].mxu0
    %662 = vdwg.mxu0
    %s663 = scalar_lea.vmem %s6, 32
    %v664 = vld [vmem:[%s663] sm:$0xf]
    %v665 = vld [vmem:[%s663 + $0x4] sm:$0xf]
    %v666 = vld [vmem:[%s663 + $0x8] sm:$0xf]
    %v667 = vld [vmem:[%s663 + $0xc] sm:$0xf]
    %v668 = vld [vmem:[%s663 + $0x10] sm:$0xf]
    %v669 = vld [vmem:[%s663 + $0x14] sm:$0xf]
    %v670 = vld [vmem:[%s663 + $0x18] sm:$0xf]
    %v671 = vld [vmem:[%s663 + $0x1c] sm:$0xf]
    %v680 = vunpack.c.l.b16 %v664
    %v681 = vunpack.c.l.b16 %v665
    %v682 = vunpack.c.l.b16 %v666
    %v683 = vunpack.c.l.b16 %v667
    %v684 = vunpack.c.l.b16 %v668
    %v685 = vunpack.c.l.b16 %v669
    %v686 = vunpack.c.l.b16 %v670
    %v687 = vunpack.c.l.b16 %v671
    %v688 = vpack.c.b16 %v681, %v680
    %v689 = vpack.c.b16 %v683, %v682
    %v690 = vpack.c.b16 %v685, %v684
    %v691 = vpack.c.b16 %v687, %v686
    %696 = vmatprep.subr.bf16.mxu0 0
    %697 = vmatpush1.bf16.msra.mxu0 %v688
    %698 = vmatprep.subr.bf16.mxu0 0
    %699 = vmatpush1.bf16.msra.mxu0 %v689
    %700 = vmatprep.subr.bf16.mxu0 0
    %701 = vmatpush1.bf16.msra.mxu0 %v690
    %702 = vmatprep.subr.bf16.mxu0 0
    %703 = vmatpush1.bf16.msra.mxu0 %v691
    %704 = vmatprep.subr.bf16.mxu0 0
    %705 = vmatpush1.bf16.msra.mxu0 0
    %706 = vmatprep.subr.bf16.mxu0 0
    %707 = vmatpush1.bf16.msra.mxu0 0
    %708 = vmatprep.subr.bf16.mxu0 0
    %709 = vmatpush1.bf16.msra.mxu0 0
    %710 = vmatprep.subr.bf16.mxu0 0
    %711 = vmatpush1.bf16.msra.mxu0 0
    %712 = vmatprep.subr.bf16.mxu0 0
    %713 = vmatpush1.bf16.msra.mxu0 0
    %714 = vmatprep.subr.bf16.mxu0 0
    %715 = vmatpush1.bf16.msra.mxu0 0
    %716 = vmatprep.subr.bf16.mxu0 0
    %717 = vmatpush1.bf16.msra.mxu0 0
    %718 = vmatprep.subr.bf16.mxu0 0
    %719 = vmatpush1.bf16.msra.mxu0 0
    %720 = vmatprep.subr.bf16.mxu0 0
    %721 = vmatpush1.bf16.msra.mxu0 0
    %722 = vmatprep.subr.bf16.mxu0 0
    %723 = vmatpush1.bf16.msra.mxu0 0
    %724 = vmatprep.subr.bf16.mxu0 0
    %725 = vmatpush1.bf16.msra.mxu0 0
    %726 = vmatprep.subr.bf16.mxu0 0
    %727 = vmatpush1.bf16.msra.mxu0 0
    %728 = vmatprep.mubr.bf16.mxu0 0
    %729 = vmatmul.mubr.bf16.gmra.mrb[0].mxu0 %v121
    %v730 = vpop.f32.mrb[0].mxu0
    %v731 = vadd.f32 0.0, %v730
    %v732 = vpop.f32.mrb[0].mxu0
    %v733 = vpop.f32.mrb[0].mxu0
    %v734 = vadd.f32 0.0, %v733
    %v735 = vpop.f32.mrb[0].mxu0
    %736 = vdwg.mxu0
    %v737 = vmul.f32 %v657, %v82
    %v738 = vmul.f32 %v660, %v83
    %v739 = vmul.f32 %v731, %v84
    %v740 = vmul.f32 %v734, %v85
    %v741 = vadd.f32 %v737, %v739
    %v742 = vadd.f32 %v738, %v740
    %v743 = vpack.c.bf16 %v742, %v741
    %v745 = vsel %vm471, %v743, 0
    %747 = vmatprep.subr.bf16.mxu0 0
    %748 = vmatpush1.bf16.xpose.msra.mxu0 %v476
    %749 = vmatprep.subr.bf16.mxu0 0
    %750 = vmatpush1.bf16.xpose.msra.mxu0 0
    %751 = vmatprep.subr.bf16.mxu0 0
    %752 = vmatpush1.bf16.xpose.msra.mxu0 0
    %753 = vmatprep.subr.bf16.mxu0 0
    %754 = vmatpush1.bf16.xpose.msra.mxu0 0
    %755 = vmatprep.subr.bf16.mxu0 0
    %756 = vmatpush1.bf16.xpose.msra.mxu0 0
    %757 = vmatprep.subr.bf16.mxu0 0
    %758 = vmatpush1.bf16.xpose.msra.mxu0 0
    %759 = vmatprep.subr.bf16.mxu0 0
    %760 = vmatpush1.bf16.xpose.msra.mxu0 0
    %761 = vmatprep.subr.bf16.mxu0 0
    %762 = vmatpush1.bf16.xpose.msra.mxu0 0
    %763 = vmatprep.subr.bf16.mxu0 0
    %764 = vmatpush1.bf16.xpose.msra.mxu0 0
    %765 = vmatprep.subr.bf16.mxu0 0
    %766 = vmatpush1.bf16.xpose.msra.mxu0 0
    %767 = vmatprep.subr.bf16.mxu0 0
    %768 = vmatpush1.bf16.xpose.msra.mxu0 0
    %769 = vmatprep.subr.bf16.mxu0 0
    %770 = vmatpush1.bf16.xpose.msra.mxu0 0
    %771 = vmatprep.subr.bf16.mxu0 0
    %772 = vmatpush1.bf16.xpose.msra.mxu0 0
    %773 = vmatprep.subr.bf16.mxu0 0
    %774 = vmatpush1.bf16.xpose.msra.mxu0 0
    %775 = vmatprep.subr.bf16.mxu0 0
    %776 = vmatpush1.bf16.xpose.msra.mxu0 0
    %777 = vmatprep.subr.bf16.mxu0 0
    %778 = vmatpush1.bf16.xpose.msra.mxu0 0
    %779 = vmatprep.mubr.bf16.mxu0 0
    %780 = vmatmul.mubr.bf16.gmra.mrb[0].mxu0 %v745
    %v781 = vpop.f32.mrb[0].mxu0
    %v782 = vadd.f32 %v86, %v781
    %v783 = vpop.f32.mrb[0].mxu0
    %v784 = vpop.f32.mrb[0].mxu0
    %v785 = vadd.f32 %v87, %v784
    %v786 = vpop.f32.mrb[0].mxu0
    %787 = vdwg.mxu0
    %v788 = vsel %vm471, %v782, -inf
    %789 = vmax.xlane.f32.xlu0 %v788
    %v790 = vpop.xlane.xlu0 %789
    %v791 = vsel %vm471, %v785, -inf
    %792 = vmax.xlane.f32.xlu0 %v791
    %v793 = vpop.xlane.xlu0 %792
    %v794 = vsub.f32 %v782, %v790
    %v795 = vsub.f32 %v785, %v793
    %v796 = vmul.f32 %v794, 1.442695
    %v797 = vpow.pop %v796
    %v798 = vmul.f32 %v795, 1.442695
    %v799 = vpow.pop %v798
    %v800 = vsel %vm471, %v797, 0.0
    %801 = vadd.xlane.f32.xlu0 %v800
    %v802 = vpop.xlane.xlu0 %801
    %v803 = vsel %vm471, %v799, 0.0
    %804 = vadd.xlane.f32.xlu0 %v803
    %v805 = vpop.xlane.xlu0 %804
    %v806 = vrcp.pop %v802
    %v807 = vrcp.pop %v805
    %v808 = vmul.f32 %v797, %v806
    %v809 = vmul.f32 %v799, %v807
    %v810 = vpack.c.bf16 %v809, %v808
    %v812 = vsel %vm471, %v810, 0
    %814 = vmatprep.subr.bf16.mxu0 0
    %815 = vmatpush1.bf16.msra.mxu0 %v317
    %816 = vmatprep.subr.bf16.mxu0 0
    %817 = vmatpush1.bf16.msra.mxu0 0
    %818 = vmatprep.subr.bf16.mxu0 0
    %819 = vmatpush1.bf16.msra.mxu0 0
    %820 = vmatprep.subr.bf16.mxu0 0
    %821 = vmatpush1.bf16.msra.mxu0 0
    %822 = vmatprep.subr.bf16.mxu0 0
    %823 = vmatpush1.bf16.msra.mxu0 0
    %824 = vmatprep.subr.bf16.mxu0 0
    %825 = vmatpush1.bf16.msra.mxu0 0
    %826 = vmatprep.subr.bf16.mxu0 0
    %827 = vmatpush1.bf16.msra.mxu0 0
    %828 = vmatprep.subr.bf16.mxu0 0
    %829 = vmatpush1.bf16.msra.mxu0 0
    %830 = vmatprep.subr.bf16.mxu0 0
    %831 = vmatpush1.bf16.msra.mxu0 0
    %832 = vmatprep.subr.bf16.mxu0 0
    %833 = vmatpush1.bf16.msra.mxu0 0
    %834 = vmatprep.subr.bf16.mxu0 0
    %835 = vmatpush1.bf16.msra.mxu0 0
    %836 = vmatprep.subr.bf16.mxu0 0
    %837 = vmatpush1.bf16.msra.mxu0 0
    %838 = vmatprep.subr.bf16.mxu0 0
    %839 = vmatpush1.bf16.msra.mxu0 0
    %840 = vmatprep.subr.bf16.mxu0 0
    %841 = vmatpush1.bf16.msra.mxu0 0
    %842 = vmatprep.subr.bf16.mxu0 0
    %843 = vmatpush1.bf16.msra.mxu0 0
    %844 = vmatprep.subr.bf16.mxu0 0
    %845 = vmatpush1.bf16.msra.mxu0 0
    %846 = vmatprep.mubr.bf16.mxu0 0
    %847 = vmatmul.mubr.bf16.gmra.mrb[0].mxu0 %v812
    %v848 = vpop.f32.mrb[0].mxu0
    %v849 = vadd.f32 0.0, %v848
    %v850 = vpop.f32.mrb[0].mxu0
    %v851 = vpop.f32.mrb[0].mxu0
    %v852 = vadd.f32 0.0, %v851
    %v853 = vpop.f32.mrb[0].mxu0
    %854 = vdwg.mxu0
    %v855 = vpack.c.bf16 %v852, %v849
    %s856 = scalar_lea.vmem %s10, 8
    %v857 = vld [vmem:[%s856] sm:$0xf]
    %v858 = vld [vmem:[%s856 + $0x4] sm:$0xf]
    %v861 = vunpack.c.l.b16 %v857
    %v862 = vunpack.c.l.b16 %v858
    %v863 = vpack.c.b16 %v862, %v861
    %v866 = vsel %vm471, %v855, 0
    %868 = vmatprep.subr.bf16.mxu0 0
    %869 = vmatpush1.bf16.msra.mxu0 %v863
    %870 = vmatprep.subr.bf16.mxu0 0
    %871 = vmatpush1.bf16.msra.mxu0 0
    %872 = vmatprep.subr.bf16.mxu0 0
    %873 = vmatpush1.bf16.msra.mxu0 0
    %874 = vmatprep.subr.bf16.mxu0 0
    %875 = vmatpush1.bf16.msra.mxu0 0
    %876 = vmatprep.subr.bf16.mxu0 0
    %877 = vmatpush1.bf16.msra.mxu0 0
    %878 = vmatprep.subr.bf16.mxu0 0
    %879 = vmatpush1.bf16.msra.mxu0 0
    %880 = vmatprep.subr.bf16.mxu0 0
    %881 = vmatpush1.bf16.msra.mxu0 0
    %882 = vmatprep.subr.bf16.mxu0 0
    %883 = vmatpush1.bf16.msra.mxu0 0
    %884 = vmatprep.subr.bf16.mxu0 0
    %885 = vmatpush1.bf16.msra.mxu0 0
    %886 = vmatprep.subr.bf16.mxu0 0
    %887 = vmatpush1.bf16.msra.mxu0 0
    %888 = vmatprep.subr.bf16.mxu0 0
    %889 = vmatpush1.bf16.msra.mxu0 0
    %890 = vmatprep.subr.bf16.mxu0 0
    %891 = vmatpush1.bf16.msra.mxu0 0
    %892 = vmatprep.subr.bf16.mxu0 0
    %893 = vmatpush1.bf16.msra.mxu0 0
    %894 = vmatprep.subr.bf16.mxu0 0
    %895 = vmatpush1.bf16.msra.mxu0 0
    %896 = vmatprep.subr.bf16.mxu0 0
    %897 = vmatpush1.bf16.msra.mxu0 0
    %898 = vmatprep.subr.bf16.mxu0 0
    %899 = vmatpush1.bf16.msra.mxu0 0
    %900 = vmatprep.mubr.bf16.mxu0 0
    %901 = vmatmul.mubr.bf16.gmra.mrb[0].mxu0 %v866
    %v902 = vpop.f32.mrb[0].mxu0
    %v903 = vadd.f32 0.0, %v902
    %v904 = vpop.f32.mrb[0].mxu0
    %v905 = vpop.f32.mrb[0].mxu0
    %v906 = vadd.f32 0.0, %v905
    %v907 = vpop.f32.mrb[0].mxu0
    %908 = vdwg.mxu0
    %v911 = vunpack.c.l.b16 %v587
    %v912 = vunpack.c.l.b16 %v588
    %v913 = vpack.c.b16 %v912, %v911
    %v916 = vsel %vm471, %v586, 0
    %918 = vmatprep.subr.bf16.mxu0 0
    %919 = vmatpush1.bf16.msra.mxu0 %v913
    %920 = vmatprep.subr.bf16.mxu0 0
    %921 = vmatpush1.bf16.msra.mxu0 0
    %922 = vmatprep.subr.bf16.mxu0 0
    %923 = vmatpush1.bf16.msra.mxu0 0
    %924 = vmatprep.subr.bf16.mxu0 0
    %925 = vmatpush1.bf16.msra.mxu0 0
    %926 = vmatprep.subr.bf16.mxu0 0
    %927 = vmatpush1.bf16.msra.mxu0 0
    %928 = vmatprep.subr.bf16.mxu0 0
    %929 = vmatpush1.bf16.msra.mxu0 0
    %930 = vmatprep.subr.bf16.mxu0 0
    %931 = vmatpush1.bf16.msra.mxu0 0
    %932 = vmatprep.subr.bf16.mxu0 0
    %933 = vmatpush1.bf16.msra.mxu0 0
    %934 = vmatprep.subr.bf16.mxu0 0
    %935 = vmatpush1.bf16.msra.mxu0 0
    %936 = vmatprep.subr.bf16.mxu0 0
    %937 = vmatpush1.bf16.msra.mxu0 0
    %938 = vmatprep.subr.bf16.mxu0 0
    %939 = vmatpush1.bf16.msra.mxu0 0
    %940 = vmatprep.subr.bf16.mxu0 0
    %941 = vmatpush1.bf16.msra.mxu0 0
    %942 = vmatprep.subr.bf16.mxu0 0
    %943 = vmatpush1.bf16.msra.mxu0 0
    %944 = vmatprep.subr.bf16.mxu0 0
    %945 = vmatpush1.bf16.msra.mxu0 0
    %946 = vmatprep.subr.bf16.mxu0 0
    %947 = vmatpush1.bf16.msra.mxu0 0
    %948 = vmatprep.subr.bf16.mxu0 0
    %949 = vmatpush1.bf16.msra.mxu0 0
    %950 = vmatprep.mubr.bf16.mxu0 0
    %951 = vmatmul.mubr.bf16.gmra.mrb[0].mxu0 %v916
    %v952 = vpop.f32.mrb[0].mxu0
    %v953 = vadd.f32 %v903, %v952
    %v954 = vpop.f32.mrb[0].mxu0
    %v955 = vpop.f32.mrb[0].mxu0
    %v956 = vadd.f32 %v906, %v955
    %v957 = vpop.f32.mrb[0].mxu0
    %958 = vdwg.mxu0
    %s959 = scalar_lea.vmem %s7, 32
    %v960 = vld [vmem:[%s959] sm:$0xf]
    %v961 = vld [vmem:[%s959 + $0x4] sm:$0xf]
    %v962 = vld [vmem:[%s959 + $0x8] sm:$0xf]
    %v963 = vld [vmem:[%s959 + $0xc] sm:$0xf]
    %v964 = vld [vmem:[%s959 + $0x10] sm:$0xf]
    %v965 = vld [vmem:[%s959 + $0x14] sm:$0xf]
    %v966 = vld [vmem:[%s959 + $0x18] sm:$0xf]
    %v967 = vld [vmem:[%s959 + $0x1c] sm:$0xf]
    %v976 = vunpack.c.l.b16 %v960
    %v977 = vunpack.c.l.b16 %v961
    %v978 = vunpack.c.l.b16 %v962
    %v979 = vunpack.c.l.b16 %v963
    %v980 = vunpack.c.l.b16 %v964
    %v981 = vunpack.c.l.b16 %v965
    %v982 = vunpack.c.l.b16 %v966
    %v983 = vunpack.c.l.b16 %v967
    %v984 = vpack.c.b16 %v977, %v976
    %v985 = vpack.c.b16 %v979, %v978
    %v986 = vpack.c.b16 %v981, %v980
    %v987 = vpack.c.b16 %v983, %v982
    %992 = vmatprep.subr.bf16.mxu0 0
    %993 = vmatpush1.bf16.msra.mxu0 %v984
    %994 = vmatprep.subr.bf16.mxu0 0
    %995 = vmatpush1.bf16.msra.mxu0 %v985
    %996 = vmatprep.subr.bf16.mxu0 0
    %997 = vmatpush1.bf16.msra.mxu0 %v986
    %998 = vmatprep.subr.bf16.mxu0 0
    %999 = vmatpush1.bf16.msra.mxu0 %v987
    %1000 = vmatprep.subr.bf16.mxu0 0
    %1001 = vmatpush1.bf16.msra.mxu0 0
    %1002 = vmatprep.subr.bf16.mxu0 0
    %1003 = vmatpush1.bf16.msra.mxu0 0
    %1004 = vmatprep.subr.bf16.mxu0 0
    %1005 = vmatpush1.bf16.msra.mxu0 0
    %1006 = vmatprep.subr.bf16.mxu0 0
    %1007 = vmatpush1.bf16.msra.mxu0 0
    %1008 = vmatprep.subr.bf16.mxu0 0
    %1009 = vmatpush1.bf16.msra.mxu0 0
    %1010 = vmatprep.subr.bf16.mxu0 0
    %1011 = vmatpush1.bf16.msra.mxu0 0
    %1012 = vmatprep.subr.bf16.mxu0 0
    %1013 = vmatpush1.bf16.msra.mxu0 0
    %1014 = vmatprep.subr.bf16.mxu0 0
    %1015 = vmatpush1.bf16.msra.mxu0 0
    %1016 = vmatprep.subr.bf16.mxu0 0
    %1017 = vmatpush1.bf16.msra.mxu0 0
    %1018 = vmatprep.subr.bf16.mxu0 0
    %1019 = vmatpush1.bf16.msra.mxu0 0
    %1020 = vmatprep.subr.bf16.mxu0 0
    %1021 = vmatpush1.bf16.msra.mxu0 0
    %1022 = vmatprep.subr.bf16.mxu0 0
    %1023 = vmatpush1.bf16.msra.mxu0 0
    %1024 = vmatprep.mubr.bf16.mxu0 0
    %1025 = vmatmul.mubr.bf16.gmra.mrb[0].mxu0 %v121
    %v1026 = vpop.f32.mrb[0].mxu0
    %v1027 = vadd.f32 0.0, %v1026
    %v1028 = vpop.f32.mrb[0].mxu0
    %v1029 = vpop.f32.mrb[0].mxu0
    %v1030 = vadd.f32 0.0, %v1029
    %v1031 = vpop.f32.mrb[0].mxu0
    %1032 = vdwg.mxu0
    %s1033 = scalar_lea.vmem %s8, 32
    %v1034 = vld [vmem:[%s1033] sm:$0xf]
    %v1035 = vld [vmem:[%s1033 + $0x4] sm:$0xf]
    %v1036 = vld [vmem:[%s1033 + $0x8] sm:$0xf]
    %v1037 = vld [vmem:[%s1033 + $0xc] sm:$0xf]
    %v1038 = vld [vmem:[%s1033 + $0x10] sm:$0xf]
    %v1039 = vld [vmem:[%s1033 + $0x14] sm:$0xf]
    %v1040 = vld [vmem:[%s1033 + $0x18] sm:$0xf]
    %v1041 = vld [vmem:[%s1033 + $0x1c] sm:$0xf]
    %v1050 = vunpack.c.l.b16 %v1034
    %v1051 = vunpack.c.l.b16 %v1035
    %v1052 = vunpack.c.l.b16 %v1036
    %v1053 = vunpack.c.l.b16 %v1037
    %v1054 = vunpack.c.l.b16 %v1038
    %v1055 = vunpack.c.l.b16 %v1039
    %v1056 = vunpack.c.l.b16 %v1040
    %v1057 = vunpack.c.l.b16 %v1041
    %v1058 = vpack.c.b16 %v1051, %v1050
    %v1059 = vpack.c.b16 %v1053, %v1052
    %v1060 = vpack.c.b16 %v1055, %v1054
    %v1061 = vpack.c.b16 %v1057, %v1056
    %1066 = vmatprep.subr.bf16.mxu0 0
    %1067 = vmatpush1.bf16.msra.mxu0 %v1058
    %1068 = vmatprep.subr.bf16.mxu0 0
    %1069 = vmatpush1.bf16.msra.mxu0 %v1059
    %1070 = vmatprep.subr.bf16.mxu0 0
    %1071 = vmatpush1.bf16.msra.mxu0 %v1060
    %1072 = vmatprep.subr.bf16.mxu0 0
    %1073 = vmatpush1.bf16.msra.mxu0 %v1061
    %1074 = vmatprep.subr.bf16.mxu0 0
    %1075 = vmatpush1.bf16.msra.mxu0 0
    %1076 = vmatprep.subr.bf16.mxu0 0
    %1077 = vmatpush1.bf16.msra.mxu0 0
    %1078 = vmatprep.subr.bf16.mxu0 0
    %1079 = vmatpush1.bf16.msra.mxu0 0
    %1080 = vmatprep.subr.bf16.mxu0 0
    %1081 = vmatpush1.bf16.msra.mxu0 0
    %1082 = vmatprep.subr.bf16.mxu0 0
    %1083 = vmatpush1.bf16.msra.mxu0 0
    %1084 = vmatprep.subr.bf16.mxu0 0
    %1085 = vmatpush1.bf16.msra.mxu0 0
    %1086 = vmatprep.subr.bf16.mxu0 0
    %1087 = vmatpush1.bf16.msra.mxu0 0
    %1088 = vmatprep.subr.bf16.mxu0 0
    %1089 = vmatpush1.bf16.msra.mxu0 0
    %1090 = vmatprep.subr.bf16.mxu0 0
    %1091 = vmatpush1.bf16.msra.mxu0 0
    %1092 = vmatprep.subr.bf16.mxu0 0
    %1093 = vmatpush1.bf16.msra.mxu0 0
    %1094 = vmatprep.subr.bf16.mxu0 0
    %1095 = vmatpush1.bf16.msra.mxu0 0
    %1096 = vmatprep.subr.bf16.mxu0 0
    %1097 = vmatpush1.bf16.msra.mxu0 0
    %1098 = vmatprep.mubr.bf16.mxu0 0
    %1099 = vmatmul.mubr.bf16.gmra.mrb[0].mxu0 %v121
    %v1100 = vpop.f32.mrb[0].mxu0
    %v1101 = vadd.f32 0.0, %v1100
    %v1102 = vpop.f32.mrb[0].mxu0
    %v1103 = vpop.f32.mrb[0].mxu0
    %v1104 = vadd.f32 0.0, %v1103
    %v1105 = vpop.f32.mrb[0].mxu0
    %1106 = vdwg.mxu0
    %v1107 = vmul.f32 %v1027, %v82
    %v1108 = vmul.f32 %v1030, %v83
    %v1109 = vmul.f32 %v1101, %v84
    %v1110 = vmul.f32 %v1104, %v85
    %v1111 = vadd.f32 %v1107, %v1109
    %v1112 = vadd.f32 %v1108, %v1110
    %v1113 = vpack.c.bf16 %v1112, %v1111
    %s1114 = scalar_lea.vmem %s9, 32
    %v1115 = vld [vmem:[%s1114] sm:$0xf]
    %v1116 = vld [vmem:[%s1114 + $0x4] sm:$0xf]
    %v1117 = vld [vmem:[%s1114 + $0x8] sm:$0xf]
    %v1118 = vld [vmem:[%s1114 + $0xc] sm:$0xf]
    %v1119 = vld [vmem:[%s1114 + $0x10] sm:$0xf]
    %v1120 = vld [vmem:[%s1114 + $0x14] sm:$0xf]
    %v1121 = vld [vmem:[%s1114 + $0x18] sm:$0xf]
    %v1122 = vld [vmem:[%s1114 + $0x1c] sm:$0xf]
    %v1131 = vunpack.c.l.b16 %v1115
    %v1132 = vunpack.c.l.b16 %v1116
    %v1133 = vunpack.c.l.b16 %v1117
    %v1134 = vunpack.c.l.b16 %v1118
    %v1135 = vunpack.c.l.b16 %v1119
    %v1136 = vunpack.c.l.b16 %v1120
    %v1137 = vunpack.c.l.b16 %v1121
    %v1138 = vunpack.c.l.b16 %v1122
    %v1139 = vpack.c.b16 %v1132, %v1131
    %v1140 = vpack.c.b16 %v1134, %v1133
    %v1141 = vpack.c.b16 %v1136, %v1135
    %v1142 = vpack.c.b16 %v1138, %v1137
    %1147 = vmatprep.subr.bf16.mxu0 0
    %1148 = vmatpush1.bf16.msra.mxu0 %v1139
    %1149 = vmatprep.subr.bf16.mxu0 0
    %1150 = vmatpush1.bf16.msra.mxu0 %v1140
    %1151 = vmatprep.subr.bf16.mxu0 0
    %1152 = vmatpush1.bf16.msra.mxu0 %v1141
    %1153 = vmatprep.subr.bf16.mxu0 0
    %1154 = vmatpush1.bf16.msra.mxu0 %v1142
    %1155 = vmatprep.subr.bf16.mxu0 0
    %1156 = vmatpush1.bf16.msra.mxu0 0
    %1157 = vmatprep.subr.bf16.mxu0 0
    %1158 = vmatpush1.bf16.msra.mxu0 0
    %1159 = vmatprep.subr.bf16.mxu0 0
    %1160 = vmatpush1.bf16.msra.mxu0 0
    %1161 = vmatprep.subr.bf16.mxu0 0
    %1162 = vmatpush1.bf16.msra.mxu0 0
    %1163 = vmatprep.subr.bf16.mxu0 0
    %1164 = vmatpush1.bf16.msra.mxu0 0
    %1165 = vmatprep.subr.bf16.mxu0 0
    %1166 = vmatpush1.bf16.msra.mxu0 0
    %1167 = vmatprep.subr.bf16.mxu0 0
    %1168 = vmatpush1.bf16.msra.mxu0 0
    %1169 = vmatprep.subr.bf16.mxu0 0
    %1170 = vmatpush1.bf16.msra.mxu0 0
    %1171 = vmatprep.subr.bf16.mxu0 0
    %1172 = vmatpush1.bf16.msra.mxu0 0
    %1173 = vmatprep.subr.bf16.mxu0 0
    %1174 = vmatpush1.bf16.msra.mxu0 0
    %1175 = vmatprep.subr.bf16.mxu0 0
    %1176 = vmatpush1.bf16.msra.mxu0 0
    %1177 = vmatprep.subr.bf16.mxu0 0
    %1178 = vmatpush1.bf16.msra.mxu0 0
    %1179 = vmatprep.mubr.bf16.mxu0 0
    %1180 = vmatmul.mubr.bf16.gmra.mrb[0].mxu0 %v121
    %v1181 = vpop.f32.mrb[0].mxu0
    %v1182 = vadd.f32 0.0, %v1181
    %v1183 = vpop.f32.mrb[0].mxu0
    %v1184 = vpop.f32.mrb[0].mxu0
    %v1185 = vadd.f32 0.0, %v1184
    %v1186 = vpop.f32.mrb[0].mxu0
    %1187 = vdwg.mxu0
    %v1188 = vpack.c.bf16 %v1185, %v1182
    %s1189 = scalar_lea.vmem %s5, 64
    %v1190 = vld [vmem:[%s1189] sm:$0xf]
    %v1191 = vld [vmem:[%s1189 + $0x4] sm:$0xf]
    %v1192 = vld [vmem:[%s1189 + $0x8] sm:$0xf]
    %v1193 = vld [vmem:[%s1189 + $0xc] sm:$0xf]
    %v1194 = vld [vmem:[%s1189 + $0x10] sm:$0xf]
    %v1195 = vld [vmem:[%s1189 + $0x14] sm:$0xf]
    %v1196 = vld [vmem:[%s1189 + $0x18] sm:$0xf]
    %v1197 = vld [vmem:[%s1189 + $0x1c] sm:$0xf]
    %v1206 = vunpack.c.l.b16 %v1190
    %v1207 = vunpack.c.l.b16 %v1191
    %v1208 = vunpack.c.l.b16 %v1192
    %v1209 = vunpack.c.l.b16 %v1193
    %v1210 = vunpack.c.l.b16 %v1194
    %v1211 = vunpack.c.l.b16 %v1195
    %v1212 = vunpack.c.l.b16 %v1196
    %v1213 = vunpack.c.l.b16 %v1197
    %v1214 = vpack.c.b16 %v1207, %v1206
    %v1215 = vpack.c.b16 %v1209, %v1208
    %v1216 = vpack.c.b16 %v1211, %v1210
    %v1217 = vpack.c.b16 %v1213, %v1212
    %1222 = vmatprep.subr.bf16.mxu0 0
    %1223 = vmatpush1.bf16.msra.mxu0 %v1214
    %1224 = vmatprep.subr.bf16.mxu0 0
    %1225 = vmatpush1.bf16.msra.mxu0 %v1215
    %1226 = vmatprep.subr.bf16.mxu0 0
    %1227 = vmatpush1.bf16.msra.mxu0 %v1216
    %1228 = vmatprep.subr.bf16.mxu0 0
    %1229 = vmatpush1.bf16.msra.mxu0 %v1217
    %1230 = vmatprep.subr.bf16.mxu0 0
    %1231 = vmatpush1.bf16.msra.mxu0 0
    %1232 = vmatprep.subr.bf16.mxu0 0
    %1233 = vmatpush1.bf16.msra.mxu0 0
    %1234 = vmatprep.subr.bf16.mxu0 0
    %1235 = vmatpush1.bf16.msra.mxu0 0
    %1236 = vmatprep.subr.bf16.mxu0 0
    %1237 = vmatpush1.bf16.msra.mxu0 0
    %1238 = vmatprep.subr.bf16.mxu0 0
    %1239 = vmatpush1.bf16.msra.mxu0 0
    %1240 = vmatprep.subr.bf16.mxu0 0
    %1241 = vmatpush1.bf16.msra.mxu0 0
    %1242 = vmatprep.subr.bf16.mxu0 0
    %1243 = vmatpush1.bf16.msra.mxu0 0
    %1244 = vmatprep.subr.bf16.mxu0 0
    %1245 = vmatpush1.bf16.msra.mxu0 0
    %1246 = vmatprep.subr.bf16.mxu0 0
    %1247 = vmatpush1.bf16.msra.mxu0 0
    %1248 = vmatprep.subr.bf16.mxu0 0
    %1249 = vmatpush1.bf16.msra.mxu0 0
    %1250 = vmatprep.subr.bf16.mxu0 0
    %1251 = vmatpush1.bf16.msra.mxu0 0
    %1252 = vmatprep.subr.bf16.mxu0 0
    %1253 = vmatpush1.bf16.msra.mxu0 0
    %1254 = vmatprep.mubr.bf16.mxu0 0
    %1255 = vmatmul.mubr.bf16.gmra.mrb[0].mxu0 %v121
    %v1256 = vpop.f32.mrb[0].mxu0
    %v1257 = vadd.f32 0.0, %v1256
    %v1258 = vpop.f32.mrb[0].mxu0
    %v1259 = vpop.f32.mrb[0].mxu0
    %v1260 = vadd.f32 0.0, %v1259
    %v1261 = vpop.f32.mrb[0].mxu0
    %1262 = vdwg.mxu0
    %s1263 = scalar_lea.vmem %s6, 64
    %v1264 = vld [vmem:[%s1263] sm:$0xf]
    %v1265 = vld [vmem:[%s1263 + $0x4] sm:$0xf]
    %v1266 = vld [vmem:[%s1263 + $0x8] sm:$0xf]
    %v1267 = vld [vmem:[%s1263 + $0xc] sm:$0xf]
    %v1268 = vld [vmem:[%s1263 + $0x10] sm:$0xf]
    %v1269 = vld [vmem:[%s1263 + $0x14] sm:$0xf]
    %v1270 = vld [vmem:[%s1263 + $0x18] sm:$0xf]
    %v1271 = vld [vmem:[%s1263 + $0x1c] sm:$0xf]
    %v1280 = vunpack.c.l.b16 %v1264
    %v1281 = vunpack.c.l.b16 %v1265
    %v1282 = vunpack.c.l.b16 %v1266
    %v1283 = vunpack.c.l.b16 %v1267
    %v1284 = vunpack.c.l.b16 %v1268
    %v1285 = vunpack.c.l.b16 %v1269
    %v1286 = vunpack.c.l.b16 %v1270
    %v1287 = vunpack.c.l.b16 %v1271
    %v1288 = vpack.c.b16 %v1281, %v1280
    %v1289 = vpack.c.b16 %v1283, %v1282
    %v1290 = vpack.c.b16 %v1285, %v1284
    %v1291 = vpack.c.b16 %v1287, %v1286
    %1296 = vmatprep.subr.bf16.mxu0 0
    %1297 = vmatpush1.bf16.msra.mxu0 %v1288
    %1298 = vmatprep.subr.bf16.mxu0 0
    %1299 = vmatpush1.bf16.msra.mxu0 %v1289
    %1300 = vmatprep.subr.bf16.mxu0 0
    %1301 = vmatpush1.bf16.msra.mxu0 %v1290
    %1302 = vmatprep.subr.bf16.mxu0 0
    %1303 = vmatpush1.bf16.msra.mxu0 %v1291
    %1304 = vmatprep.subr.bf16.mxu0 0
    %1305 = vmatpush1.bf16.msra.mxu0 0
    %1306 = vmatprep.subr.bf16.mxu0 0
    %1307 = vmatpush1.bf16.msra.mxu0 0
    %1308 = vmatprep.subr.bf16.mxu0 0
    %1309 = vmatpush1.bf16.msra.mxu0 0
    %1310 = vmatprep.subr.bf16.mxu0 0
    %1311 = vmatpush1.bf16.msra.mxu0 0
    %1312 = vmatprep.subr.bf16.mxu0 0
    %1313 = vmatpush1.bf16.msra.mxu0 0
    %1314 = vmatprep.subr.bf16.mxu0 0
    %1315 = vmatpush1.bf16.msra.mxu0 0
    %1316 = vmatprep.subr.bf16.mxu0 0
    %1317 = vmatpush1.bf16.msra.mxu0 0
    %1318 = vmatprep.subr.bf16.mxu0 0
    %1319 = vmatpush1.bf16.msra.mxu0 0
    %1320 = vmatprep.subr.bf16.mxu0 0
    %1321 = vmatpush1.bf16.msra.mxu0 0
    %1322 = vmatprep.subr.bf16.mxu0 0
    %1323 = vmatpush1.bf16.msra.mxu0 0
    %1324 = vmatprep.subr.bf16.mxu0 0
    %1325 = vmatpush1.bf16.msra.mxu0 0
    %1326 = vmatprep.subr.bf16.mxu0 0
    %1327 = vmatpush1.bf16.msra.mxu0 0
    %1328 = vmatprep.mubr.bf16.mxu0 0
    %1329 = vmatmul.mubr.bf16.gmra.mrb[0].mxu0 %v121
    %v1330 = vpop.f32.mrb[0].mxu0
    %v1331 = vadd.f32 0.0, %v1330
    %v1332 = vpop.f32.mrb[0].mxu0
    %v1333 = vpop.f32.mrb[0].mxu0
    %v1334 = vadd.f32 0.0, %v1333
    %v1335 = vpop.f32.mrb[0].mxu0
    %1336 = vdwg.mxu0
    %v1337 = vmul.f32 %v1257, %v82
    %v1338 = vmul.f32 %v1260, %v83
    %v1339 = vmul.f32 %v1331, %v84
    %v1340 = vmul.f32 %v1334, %v85
    %v1341 = vadd.f32 %v1337, %v1339
    %v1342 = vadd.f32 %v1338, %v1340
    %v1343 = vpack.c.bf16 %v1342, %v1341
    %v1345 = vsel %vm471, %v1343, 0
    %v1348 = vsel %vm471, %v1113, 0
    %1350 = vmatprep.subr.bf16.mxu0 0
    %1351 = vmatpush1.bf16.xpose.msra.mxu0 %v1348
    %1352 = vmatprep.subr.bf16.mxu0 0
    %1353 = vmatpush1.bf16.xpose.msra.mxu0 0
    %1354 = vmatprep.subr.bf16.mxu0 0
    %1355 = vmatpush1.bf16.xpose.msra.mxu0 0
    %1356 = vmatprep.subr.bf16.mxu0 0
    %1357 = vmatpush1.bf16.xpose.msra.mxu0 0
    %1358 = vmatprep.subr.bf16.mxu0 0
    %1359 = vmatpush1.bf16.xpose.msra.mxu0 0
    %1360 = vmatprep.subr.bf16.mxu0 0
    %1361 = vmatpush1.bf16.xpose.msra.mxu0 0
    %1362 = vmatprep.subr.bf16.mxu0 0
    %1363 = vmatpush1.bf16.xpose.msra.mxu0 0
    %1364 = vmatprep.subr.bf16.mxu0 0
    %1365 = vmatpush1.bf16.xpose.msra.mxu0 0
    %1366 = vmatprep.subr.bf16.mxu0 0
    %1367 = vmatpush1.bf16.xpose.msra.mxu0 0
    %1368 = vmatprep.subr.bf16.mxu0 0
    %1369 = vmatpush1.bf16.xpose.msra.mxu0 0
    %1370 = vmatprep.subr.bf16.mxu0 0
    %1371 = vmatpush1.bf16.xpose.msra.mxu0 0
    %1372 = vmatprep.subr.bf16.mxu0 0
    %1373 = vmatpush1.bf16.xpose.msra.mxu0 0
    %1374 = vmatprep.subr.bf16.mxu0 0
    %1375 = vmatpush1.bf16.xpose.msra.mxu0 0
    %1376 = vmatprep.subr.bf16.mxu0 0
    %1377 = vmatpush1.bf16.xpose.msra.mxu0 0
    %1378 = vmatprep.subr.bf16.mxu0 0
    %1379 = vmatpush1.bf16.xpose.msra.mxu0 0
    %1380 = vmatprep.subr.bf16.mxu0 0
    %1381 = vmatpush1.bf16.xpose.msra.mxu0 0
    %1382 = vmatprep.mubr.bf16.mxu0 0
    %1383 = vmatmul.mubr.bf16.gmra.mrb[0].mxu0 %v1345
    %v1384 = vpop.f32.mrb[0].mxu0
    %v1385 = vadd.f32 %v86, %v1384
    %v1386 = vpop.f32.mrb[0].mxu0
    %v1387 = vpop.f32.mrb[0].mxu0
    %v1388 = vadd.f32 %v87, %v1387
    %v1389 = vpop.f32.mrb[0].mxu0
    %1390 = vdwg.mxu0
    %v1391 = vsel %vm471, %v1385, -inf
    %1392 = vmax.xlane.f32.xlu0 %v1391
    %v1393 = vpop.xlane.xlu0 %1392
    %v1394 = vsel %vm471, %v1388, -inf
    %1395 = vmax.xlane.f32.xlu0 %v1394
    %v1396 = vpop.xlane.xlu0 %1395
    %v1397 = vsub.f32 %v1385, %v1393
    %v1398 = vsub.f32 %v1388, %v1396
    %v1399 = vmul.f32 %v1397, 1.442695
    %v1400 = vpow.pop %v1399
    %v1401 = vmul.f32 %v1398, 1.442695
    %v1402 = vpow.pop %v1401
    %v1403 = vsel %vm471, %v1400, 0.0
    %1404 = vadd.xlane.f32.xlu0 %v1403
    %v1405 = vpop.xlane.xlu0 %1404
    %v1406 = vsel %vm471, %v1402, 0.0
    %1407 = vadd.xlane.f32.xlu0 %v1406
    %v1408 = vpop.xlane.xlu0 %1407
    %v1409 = vrcp.pop %v1405
    %v1410 = vrcp.pop %v1408
    %v1411 = vmul.f32 %v1400, %v1409
    %v1412 = vmul.f32 %v1402, %v1410
    %v1413 = vpack.c.bf16 %v1412, %v1411
    %v1415 = vsel %vm471, %v1413, 0
    %1417 = vmatprep.subr.bf16.mxu0 0
    %1418 = vmatpush1.bf16.msra.mxu0 %v1188
    %1419 = vmatprep.subr.bf16.mxu0 0
    %1420 = vmatpush1.bf16.msra.mxu0 0
    %1421 = vmatprep.subr.bf16.mxu0 0
    %1422 = vmatpush1.bf16.msra.mxu0 0
    %1423 = vmatprep.subr.bf16.mxu0 0
    %1424 = vmatpush1.bf16.msra.mxu0 0
    %1425 = vmatprep.subr.bf16.mxu0 0
    %1426 = vmatpush1.bf16.msra.mxu0 0
    %1427 = vmatprep.subr.bf16.mxu0 0
    %1428 = vmatpush1.bf16.msra.mxu0 0
    %1429 = vmatprep.subr.bf16.mxu0 0
    %1430 = vmatpush1.bf16.msra.mxu0 0
    %1431 = vmatprep.subr.bf16.mxu0 0
    %1432 = vmatpush1.bf16.msra.mxu0 0
    %1433 = vmatprep.subr.bf16.mxu0 0
    %1434 = vmatpush1.bf16.msra.mxu0 0
    %1435 = vmatprep.subr.bf16.mxu0 0
    %1436 = vmatpush1.bf16.msra.mxu0 0
    %1437 = vmatprep.subr.bf16.mxu0 0
    %1438 = vmatpush1.bf16.msra.mxu0 0
    %1439 = vmatprep.subr.bf16.mxu0 0
    %1440 = vmatpush1.bf16.msra.mxu0 0
    %1441 = vmatprep.subr.bf16.mxu0 0
    %1442 = vmatpush1.bf16.msra.mxu0 0
    %1443 = vmatprep.subr.bf16.mxu0 0
    %1444 = vmatpush1.bf16.msra.mxu0 0
    %1445 = vmatprep.subr.bf16.mxu0 0
    %1446 = vmatpush1.bf16.msra.mxu0 0
    %1447 = vmatprep.subr.bf16.mxu0 0
    %1448 = vmatpush1.bf16.msra.mxu0 0
    %1449 = vmatprep.mubr.bf16.mxu0 0
    %1450 = vmatmul.mubr.bf16.gmra.mrb[0].mxu0 %v1415
    %v1451 = vpop.f32.mrb[0].mxu0
    %v1452 = vadd.f32 0.0, %v1451
    %v1453 = vpop.f32.mrb[0].mxu0
    %v1454 = vpop.f32.mrb[0].mxu0
    %v1455 = vadd.f32 0.0, %v1454
    %v1456 = vpop.f32.mrb[0].mxu0
    %1457 = vdwg.mxu0
    %v1458 = vpack.c.bf16 %v1455, %v1452
    %s1459 = scalar_lea.vmem %s10, 16
    %v1460 = vld [vmem:[%s1459] sm:$0xf]
    %v1461 = vld [vmem:[%s1459 + $0x4] sm:$0xf]
    %v1464 = vunpack.c.l.b16 %v1460
    %v1465 = vunpack.c.l.b16 %v1461
    %v1466 = vpack.c.b16 %v1465, %v1464
    %v1469 = vsel %vm471, %v1458, 0
    %1471 = vmatprep.subr.bf16.mxu0 0
    %1472 = vmatpush1.bf16.msra.mxu0 %v1466
    %1473 = vmatprep.subr.bf16.mxu0 0
    %1474 = vmatpush1.bf16.msra.mxu0 0
    %1475 = vmatprep.subr.bf16.mxu0 0
    %1476 = vmatpush1.bf16.msra.mxu0 0
    %1477 = vmatprep.subr.bf16.mxu0 0
    %1478 = vmatpush1.bf16.msra.mxu0 0
    %1479 = vmatprep.subr.bf16.mxu0 0
    %1480 = vmatpush1.bf16.msra.mxu0 0
    %1481 = vmatprep.subr.bf16.mxu0 0
    %1482 = vmatpush1.bf16.msra.mxu0 0
    %1483 = vmatprep.subr.bf16.mxu0 0
    %1484 = vmatpush1.bf16.msra.mxu0 0
    %1485 = vmatprep.subr.bf16.mxu0 0
    %1486 = vmatpush1.bf16.msra.mxu0 0
    %1487 = vmatprep.subr.bf16.mxu0 0
    %1488 = vmatpush1.bf16.msra.mxu0 0
    %1489 = vmatprep.subr.bf16.mxu0 0
    %1490 = vmatpush1.bf16.msra.mxu0 0
    %1491 = vmatprep.subr.bf16.mxu0 0
    %1492 = vmatpush1.bf16.msra.mxu0 0
    %1493 = vmatprep.subr.bf16.mxu0 0
    %1494 = vmatpush1.bf16.msra.mxu0 0
    %1495 = vmatprep.subr.bf16.mxu0 0
    %1496 = vmatpush1.bf16.msra.mxu0 0
    %1497 = vmatprep.subr.bf16.mxu0 0
    %1498 = vmatpush1.bf16.msra.mxu0 0
    %1499 = vmatprep.subr.bf16.mxu0 0
    %1500 = vmatpush1.bf16.msra.mxu0 0
    %1501 = vmatprep.subr.bf16.mxu0 0
    %1502 = vmatpush1.bf16.msra.mxu0 0
    %1503 = vmatprep.mubr.bf16.mxu0 0
    %1504 = vmatmul.mubr.bf16.gmra.mrb[0].mxu0 %v1469
    %v1505 = vpop.f32.mrb[0].mxu0
    %v1506 = vadd.f32 0.0, %v1505
    %v1507 = vpop.f32.mrb[0].mxu0
    %v1508 = vpop.f32.mrb[0].mxu0
    %v1509 = vadd.f32 0.0, %v1508
    %v1510 = vpop.f32.mrb[0].mxu0
    %1511 = vdwg.mxu0
    %v1512 = vadd.f32 %v953, %v1506
    %v1513 = vadd.f32 %v956, %v1509
    %s1514 = scalar_lea.vmem %s5, 96
    %v1515 = vld [vmem:[%s1514] sm:$0xf]
    %v1516 = vld [vmem:[%s1514 + $0x4] sm:$0xf]
    %v1517 = vld [vmem:[%s1514 + $0x8] sm:$0xf]
    %v1518 = vld [vmem:[%s1514 + $0xc] sm:$0xf]
    %v1519 = vld [vmem:[%s1514 + $0x10] sm:$0xf]
    %v1520 = vld [vmem:[%s1514 + $0x14] sm:$0xf]
    %v1521 = vld [vmem:[%s1514 + $0x18] sm:$0xf]
    %v1522 = vld [vmem:[%s1514 + $0x1c] sm:$0xf]
    %v1531 = vunpack.c.l.b16 %v1515
    %v1532 = vunpack.c.l.b16 %v1516
    %v1533 = vunpack.c.l.b16 %v1517
    %v1534 = vunpack.c.l.b16 %v1518
    %v1535 = vunpack.c.l.b16 %v1519
    %v1536 = vunpack.c.l.b16 %v1520
    %v1537 = vunpack.c.l.b16 %v1521
    %v1538 = vunpack.c.l.b16 %v1522
    %v1539 = vpack.c.b16 %v1532, %v1531
    %v1540 = vpack.c.b16 %v1534, %v1533
    %v1541 = vpack.c.b16 %v1536, %v1535
    %v1542 = vpack.c.b16 %v1538, %v1537
    %1547 = vmatprep.subr.bf16.mxu0 0
    %1548 = vmatpush1.bf16.msra.mxu0 %v1539
    %1549 = vmatprep.subr.bf16.mxu0 0
    %1550 = vmatpush1.bf16.msra.mxu0 %v1540
    %1551 = vmatprep.subr.bf16.mxu0 0
    %1552 = vmatpush1.bf16.msra.mxu0 %v1541
    %1553 = vmatprep.subr.bf16.mxu0 0
    %1554 = vmatpush1.bf16.msra.mxu0 %v1542
    %1555 = vmatprep.subr.bf16.mxu0 0
    %1556 = vmatpush1.bf16.msra.mxu0 0
    %1557 = vmatprep.subr.bf16.mxu0 0
    %1558 = vmatpush1.bf16.msra.mxu0 0
    %1559 = vmatprep.subr.bf16.mxu0 0
    %1560 = vmatpush1.bf16.msra.mxu0 0
    %1561 = vmatprep.subr.bf16.mxu0 0
    %1562 = vmatpush1.bf16.msra.mxu0 0
    %1563 = vmatprep.subr.bf16.mxu0 0
    %1564 = vmatpush1.bf16.msra.mxu0 0
    %1565 = vmatprep.subr.bf16.mxu0 0
    %1566 = vmatpush1.bf16.msra.mxu0 0
    %1567 = vmatprep.subr.bf16.mxu0 0
    %1568 = vmatpush1.bf16.msra.mxu0 0
    %1569 = vmatprep.subr.bf16.mxu0 0
    %1570 = vmatpush1.bf16.msra.mxu0 0
    %1571 = vmatprep.subr.bf16.mxu0 0
    %1572 = vmatpush1.bf16.msra.mxu0 0
    %1573 = vmatprep.subr.bf16.mxu0 0
    %1574 = vmatpush1.bf16.msra.mxu0 0
    %1575 = vmatprep.subr.bf16.mxu0 0
    %1576 = vmatpush1.bf16.msra.mxu0 0
    %1577 = vmatprep.subr.bf16.mxu0 0
    %1578 = vmatpush1.bf16.msra.mxu0 0
    %1579 = vmatprep.mubr.bf16.mxu0 0
    %1580 = vmatmul.mubr.bf16.gmra.mrb[0].mxu0 %v121
    %v1581 = vpop.f32.mrb[0].mxu0
    %v1582 = vadd.f32 0.0, %v1581
    %v1583 = vpop.f32.mrb[0].mxu0
    %v1584 = vpop.f32.mrb[0].mxu0
    %v1585 = vadd.f32 0.0, %v1584
    %v1586 = vpop.f32.mrb[0].mxu0
    %1587 = vdwg.mxu0
    %s1588 = scalar_lea.vmem %s6, 96
    %v1589 = vld [vmem:[%s1588] sm:$0xf]
    %v1590 = vld [vmem:[%s1588 + $0x4] sm:$0xf]
    %v1591 = vld [vmem:[%s1588 + $0x8] sm:$0xf]
    %v1592 = vld [vmem:[%s1588 + $0xc] sm:$0xf]
    %v1593 = vld [vmem:[%s1588 + $0x10] sm:$0xf]
    %v1594 = vld [vmem:[%s1588 + $0x14] sm:$0xf]
    %v1595 = vld [vmem:[%s1588 + $0x18] sm:$0xf]
    %v1596 = vld [vmem:[%s1588 + $0x1c] sm:$0xf]
    %v1605 = vunpack.c.l.b16 %v1589
    %v1606 = vunpack.c.l.b16 %v1590
    %v1607 = vunpack.c.l.b16 %v1591
    %v1608 = vunpack.c.l.b16 %v1592
    %v1609 = vunpack.c.l.b16 %v1593
    %v1610 = vunpack.c.l.b16 %v1594
    %v1611 = vunpack.c.l.b16 %v1595
    %v1612 = vunpack.c.l.b16 %v1596
    %v1613 = vpack.c.b16 %v1606, %v1605
    %v1614 = vpack.c.b16 %v1608, %v1607
    %v1615 = vpack.c.b16 %v1610, %v1609
    %v1616 = vpack.c.b16 %v1612, %v1611
    %1621 = vmatprep.subr.bf16.mxu0 0
    %1622 = vmatpush1.bf16.msra.mxu0 %v1613
    %1623 = vmatprep.subr.bf16.mxu0 0
    %1624 = vmatpush1.bf16.msra.mxu0 %v1614
    %1625 = vmatprep.subr.bf16.mxu0 0
    %1626 = vmatpush1.bf16.msra.mxu0 %v1615
    %1627 = vmatprep.subr.bf16.mxu0 0
    %1628 = vmatpush1.bf16.msra.mxu0 %v1616
    %1629 = vmatprep.subr.bf16.mxu0 0
    %1630 = vmatpush1.bf16.msra.mxu0 0
    %1631 = vmatprep.subr.bf16.mxu0 0
    %1632 = vmatpush1.bf16.msra.mxu0 0
    %1633 = vmatprep.subr.bf16.mxu0 0
    %1634 = vmatpush1.bf16.msra.mxu0 0
    %1635 = vmatprep.subr.bf16.mxu0 0
    %1636 = vmatpush1.bf16.msra.mxu0 0
    %1637 = vmatprep.subr.bf16.mxu0 0
    %1638 = vmatpush1.bf16.msra.mxu0 0
    %1639 = vmatprep.subr.bf16.mxu0 0
    %1640 = vmatpush1.bf16.msra.mxu0 0
    %1641 = vmatprep.subr.bf16.mxu0 0
    %1642 = vmatpush1.bf16.msra.mxu0 0
    %1643 = vmatprep.subr.bf16.mxu0 0
    %1644 = vmatpush1.bf16.msra.mxu0 0
    %1645 = vmatprep.subr.bf16.mxu0 0
    %1646 = vmatpush1.bf16.msra.mxu0 0
    %1647 = vmatprep.subr.bf16.mxu0 0
    %1648 = vmatpush1.bf16.msra.mxu0 0
    %1649 = vmatprep.subr.bf16.mxu0 0
    %1650 = vmatpush1.bf16.msra.mxu0 0
    %1651 = vmatprep.subr.bf16.mxu0 0
    %1652 = vmatpush1.bf16.msra.mxu0 0
    %1653 = vmatprep.mubr.bf16.mxu0 0
    %1654 = vmatmul.mubr.bf16.gmra.mrb[0].mxu0 %v121
    %v1655 = vpop.f32.mrb[0].mxu0
    %v1656 = vadd.f32 0.0, %v1655
    %v1657 = vpop.f32.mrb[0].mxu0
    %v1658 = vpop.f32.mrb[0].mxu0
    %v1659 = vadd.f32 0.0, %v1658
    %v1660 = vpop.f32.mrb[0].mxu0
    %1661 = vdwg.mxu0
    %v1662 = vmul.f32 %v1582, %v82
    %v1663 = vmul.f32 %v1585, %v83
    %v1664 = vmul.f32 %v1656, %v84
    %v1665 = vmul.f32 %v1659, %v85
    %v1666 = vadd.f32 %v1662, %v1664
    %v1667 = vadd.f32 %v1663, %v1665
    %v1668 = vpack.c.bf16 %v1667, %v1666
    %v1670 = vsel %vm471, %v1668, 0
    %1672 = vmatprep.subr.bf16.mxu0 0
    %1673 = vmatpush1.bf16.xpose.msra.mxu0 %v1348
    %1674 = vmatprep.subr.bf16.mxu0 0
    %1675 = vmatpush1.bf16.xpose.msra.mxu0 0
    %1676 = vmatprep.subr.bf16.mxu0 0
    %1677 = vmatpush1.bf16.xpose.msra.mxu0 0
    %1678 = vmatprep.subr.bf16.mxu0 0
    %1679 = vmatpush1.bf16.xpose.msra.mxu0 0
    %1680 = vmatprep.subr.bf16.mxu0 0
    %1681 = vmatpush1.bf16.xpose.msra.mxu0 0
    %1682 = vmatprep.subr.bf16.mxu0 0
    %1683 = vmatpush1.bf16.xpose.msra.mxu0 0
    %1684 = vmatprep.subr.bf16.mxu0 0
    %1685 = vmatpush1.bf16.xpose.msra.mxu0 0
    %1686 = vmatprep.subr.bf16.mxu0 0
    %1687 = vmatpush1.bf16.xpose.msra.mxu0 0
    %1688 = vmatprep.subr.bf16.mxu0 0
    %1689 = vmatpush1.bf16.xpose.msra.mxu0 0
    %1690 = vmatprep.subr.bf16.mxu0 0
    %1691 = vmatpush1.bf16.xpose.msra.mxu0 0
    %1692 = vmatprep.subr.bf16.mxu0 0
    %1693 = vmatpush1.bf16.xpose.msra.mxu0 0
    %1694 = vmatprep.subr.bf16.mxu0 0
    %1695 = vmatpush1.bf16.xpose.msra.mxu0 0
    %1696 = vmatprep.subr.bf16.mxu0 0
    %1697 = vmatpush1.bf16.xpose.msra.mxu0 0
    %1698 = vmatprep.subr.bf16.mxu0 0
    %1699 = vmatpush1.bf16.xpose.msra.mxu0 0
    %1700 = vmatprep.subr.bf16.mxu0 0
    %1701 = vmatpush1.bf16.xpose.msra.mxu0 0
    %1702 = vmatprep.subr.bf16.mxu0 0
    %1703 = vmatpush1.bf16.xpose.msra.mxu0 0
    %1704 = vmatprep.mubr.bf16.mxu0 0
    %1705 = vmatmul.mubr.bf16.gmra.mrb[0].mxu0 %v1670
    %v1706 = vpop.f32.mrb[0].mxu0
    %v1707 = vadd.f32 %v86, %v1706
    %v1708 = vpop.f32.mrb[0].mxu0
    %v1709 = vpop.f32.mrb[0].mxu0
    %v1710 = vadd.f32 %v87, %v1709
    %v1711 = vpop.f32.mrb[0].mxu0
    %1712 = vdwg.mxu0
    %v1713 = vsel %vm471, %v1707, -inf
    %1714 = vmax.xlane.f32.xlu0 %v1713
    %v1715 = vpop.xlane.xlu0 %1714
    %v1716 = vsel %vm471, %v1710, -inf
    %1717 = vmax.xlane.f32.xlu0 %v1716
    %v1718 = vpop.xlane.xlu0 %1717
    %v1719 = vsub.f32 %v1707, %v1715
    %v1720 = vsub.f32 %v1710, %v1718
    %v1721 = vmul.f32 %v1719, 1.442695
    %v1722 = vpow.pop %v1721
    %v1723 = vmul.f32 %v1720, 1.442695
    %v1724 = vpow.pop %v1723
    %v1725 = vsel %vm471, %v1722, 0.0
    %1726 = vadd.xlane.f32.xlu0 %v1725
    %v1727 = vpop.xlane.xlu0 %1726
    %v1728 = vsel %vm471, %v1724, 0.0
    %1729 = vadd.xlane.f32.xlu0 %v1728
    %v1730 = vpop.xlane.xlu0 %1729
    %v1731 = vrcp.pop %v1727
    %v1732 = vrcp.pop %v1730
    %v1733 = vmul.f32 %v1722, %v1731
    %v1734 = vmul.f32 %v1724, %v1732
    %v1735 = vpack.c.bf16 %v1734, %v1733
    %v1737 = vsel %vm471, %v1735, 0
    %1739 = vmatprep.subr.bf16.mxu0 0
    %1740 = vmatpush1.bf16.msra.mxu0 %v1188
    %1741 = vmatprep.subr.bf16.mxu0 0
    %1742 = vmatpush1.bf16.msra.mxu0 0
    %1743 = vmatprep.subr.bf16.mxu0 0
    %1744 = vmatpush1.bf16.msra.mxu0 0
    %1745 = vmatprep.subr.bf16.mxu0 0
    %1746 = vmatpush1.bf16.msra.mxu0 0
    %1747 = vmatprep.subr.bf16.mxu0 0
    %1748 = vmatpush1.bf16.msra.mxu0 0
    %1749 = vmatprep.subr.bf16.mxu0 0
    %1750 = vmatpush1.bf16.msra.mxu0 0
    %1751 = vmatprep.subr.bf16.mxu0 0
    %1752 = vmatpush1.bf16.msra.mxu0 0
    %1753 = vmatprep.subr.bf16.mxu0 0
    %1754 = vmatpush1.bf16.msra.mxu0 0
    %1755 = vmatprep.subr.bf16.mxu0 0
    %1756 = vmatpush1.bf16.msra.mxu0 0
    %1757 = vmatprep.subr.bf16.mxu0 0
    %1758 = vmatpush1.bf16.msra.mxu0 0
    %1759 = vmatprep.subr.bf16.mxu0 0
    %1760 = vmatpush1.bf16.msra.mxu0 0
    %1761 = vmatprep.subr.bf16.mxu0 0
    %1762 = vmatpush1.bf16.msra.mxu0 0
    %1763 = vmatprep.subr.bf16.mxu0 0
    %1764 = vmatpush1.bf16.msra.mxu0 0
    %1765 = vmatprep.subr.bf16.mxu0 0
    %1766 = vmatpush1.bf16.msra.mxu0 0
    %1767 = vmatprep.subr.bf16.mxu0 0
    %1768 = vmatpush1.bf16.msra.mxu0 0
    %1769 = vmatprep.subr.bf16.mxu0 0
    %1770 = vmatpush1.bf16.msra.mxu0 0
    %1771 = vmatprep.mubr.bf16.mxu0 0
    %1772 = vmatmul.mubr.bf16.gmra.mrb[0].mxu0 %v1737
    %v1773 = vpop.f32.mrb[0].mxu0
    %v1774 = vadd.f32 0.0, %v1773
    %v1775 = vpop.f32.mrb[0].mxu0
    %v1776 = vpop.f32.mrb[0].mxu0
    %v1777 = vadd.f32 0.0, %v1776
    %v1778 = vpop.f32.mrb[0].mxu0
    %1779 = vdwg.mxu0
    %v1780 = vpack.c.bf16 %v1777, %v1774
    %s1781 = scalar_lea.vmem %s10, 24
    %v1782 = vld [vmem:[%s1781] sm:$0xf]
    %v1783 = vld [vmem:[%s1781 + $0x4] sm:$0xf]
    %v1786 = vunpack.c.l.b16 %v1782
    %v1787 = vunpack.c.l.b16 %v1783
    %v1788 = vpack.c.b16 %v1787, %v1786
    %v1791 = vsel %vm471, %v1780, 0
    %1793 = vmatprep.subr.bf16.mxu0 0
    %1794 = vmatpush1.bf16.msra.mxu0 %v1788
    %1795 = vmatprep.subr.bf16.mxu0 0
    %1796 = vmatpush1.bf16.msra.mxu0 0
    %1797 = vmatprep.subr.bf16.mxu0 0
    %1798 = vmatpush1.bf16.msra.mxu0 0
    %1799 = vmatprep.subr.bf16.mxu0 0
    %1800 = vmatpush1.bf16.msra.mxu0 0
    %1801 = vmatprep.subr.bf16.mxu0 0
    %1802 = vmatpush1.bf16.msra.mxu0 0
    %1803 = vmatprep.subr.bf16.mxu0 0
    %1804 = vmatpush1.bf16.msra.mxu0 0
    %1805 = vmatprep.subr.bf16.mxu0 0
    %1806 = vmatpush1.bf16.msra.mxu0 0
    %1807 = vmatprep.subr.bf16.mxu0 0
    %1808 = vmatpush1.bf16.msra.mxu0 0
    %1809 = vmatprep.subr.bf16.mxu0 0
    %1810 = vmatpush1.bf16.msra.mxu0 0
    %1811 = vmatprep.subr.bf16.mxu0 0
    %1812 = vmatpush1.bf16.msra.mxu0 0
    %1813 = vmatprep.subr.bf16.mxu0 0
    %1814 = vmatpush1.bf16.msra.mxu0 0
    %1815 = vmatprep.subr.bf16.mxu0 0
    %1816 = vmatpush1.bf16.msra.mxu0 0
    %1817 = vmatprep.subr.bf16.mxu0 0
    %1818 = vmatpush1.bf16.msra.mxu0 0
    %1819 = vmatprep.subr.bf16.mxu0 0
    %1820 = vmatpush1.bf16.msra.mxu0 0
    %1821 = vmatprep.subr.bf16.mxu0 0
    %1822 = vmatpush1.bf16.msra.mxu0 0
    %1823 = vmatprep.subr.bf16.mxu0 0
    %1824 = vmatpush1.bf16.msra.mxu0 0
    %1825 = vmatprep.mubr.bf16.mxu0 0
    %1826 = vmatmul.mubr.bf16.gmra.mrb[0].mxu0 %v1791
    %v1827 = vpop.f32.mrb[0].mxu0
    %v1828 = vadd.f32 0.0, %v1827
    %v1829 = vpop.f32.mrb[0].mxu0
    %v1830 = vpop.f32.mrb[0].mxu0
    %v1831 = vadd.f32 0.0, %v1830
    %v1832 = vpop.f32.mrb[0].mxu0
    %1833 = vdwg.mxu0
    %v1834 = vadd.f32 %v1512, %v1828
    %v1835 = vadd.f32 %v1513, %v1831
    %v1836 = vadd.f32 %v52, %v1834
    %v1837 = vadd.f32 %v53, %v1835
    %v1838 = vmul.f32 %v1836, %v1836
    %v1839 = vmul.f32 %v1837, %v1837
    %v1840 = vsel %vm56, %v1838, 0.0
    %1841 = vadd.xlane.f32.xlu0 %v1840
    %v1842 = vpop.xlane.xlu0 %1841
    %v1843 = vsel %vm56, %v1839, 0.0
    %1844 = vadd.xlane.f32.xlu0 %v1843
    %v1845 = vpop.xlane.xlu0 %1844
    %v1846 = vmul.f32 %v1842, %v63
    %v1847 = vmul.f32 %v1845, %v63
    %v1848 = vadd.f32 %v1846, 1e-06
    %v1849 = vadd.f32 %v1847, 1e-06
    %v1850 = vrsqrt.pop %v1848
    %v1851 = vrsqrt.pop %v1849
    %v1852 = vmul.f32 %v1836, %v1850
    %v1853 = vmul.f32 %v1837, %v1851
    %v1854 = vld [vmem:[%s11] sm:$0x1]
    %v1856 = vlaneseq
    %v1857 = vshrl.u32 %v1856, 7
    %v1858 = vsub.s32 0, %v1857
    %v1859 = vrot.slane %v1854, %v1858
    %v1861 = vmul.f32 %v1852, %v1859
    %v1862 = vmul.f32 %v1853, %v1859
    %v1863 = vpack.c.bf16 %v1862, %v1861
    %v1864 = vld [vmem:[%s12] sm:$0xf]
    %v1865 = vld [vmem:[%s12 + $0x4] sm:$0xf]
    %v1866 = vld [vmem:[%s12 + $0x8] sm:$0xf]
    %v1867 = vld [vmem:[%s12 + $0xc] sm:$0xf]
    %v1868 = vld [vmem:[%s12 + $0x10] sm:$0xf]
    %v1869 = vld [vmem:[%s12 + $0x14] sm:$0xf]
    %v1870 = vld [vmem:[%s12 + $0x18] sm:$0xf]
    %v1871 = vld [vmem:[%s12 + $0x1c] sm:$0xf]
    %v1880 = vunpack.c.l.b16 %v1864
    %v1881 = vunpack.c.l.b16 %v1865
    %v1882 = vunpack.c.l.b16 %v1866
    %v1883 = vunpack.c.l.b16 %v1867
    %v1884 = vunpack.c.l.b16 %v1868
    %v1885 = vunpack.c.l.b16 %v1869
    %v1886 = vunpack.c.l.b16 %v1870
    %v1887 = vunpack.c.l.b16 %v1871
    %v1888 = vpack.c.b16 %v1881, %v1880
    %v1889 = vpack.c.b16 %v1883, %v1882
    %v1890 = vpack.c.b16 %v1885, %v1884
    %v1891 = vpack.c.b16 %v1887, %v1886
    %v1897 = vsel %vm56, %v1863, 0
    %1899 = vmatprep.subr.bf16.mxu0 0
    %1900 = vmatpush1.bf16.msra.mxu0 %v1888
    %1901 = vmatprep.subr.bf16.mxu0 0
    %1902 = vmatpush1.bf16.msra.mxu0 %v1889
    %1903 = vmatprep.subr.bf16.mxu0 0
    %1904 = vmatpush1.bf16.msra.mxu0 %v1890
    %1905 = vmatprep.subr.bf16.mxu0 0
    %1906 = vmatpush1.bf16.msra.mxu0 %v1891
    %1907 = vmatprep.subr.bf16.mxu0 0
    %1908 = vmatpush1.bf16.msra.mxu0 0
    %1909 = vmatprep.subr.bf16.mxu0 0
    %1910 = vmatpush1.bf16.msra.mxu0 0
    %1911 = vmatprep.subr.bf16.mxu0 0
    %1912 = vmatpush1.bf16.msra.mxu0 0
    %1913 = vmatprep.subr.bf16.mxu0 0
    %1914 = vmatpush1.bf16.msra.mxu0 0
    %1915 = vmatprep.subr.bf16.mxu0 0
    %1916 = vmatpush1.bf16.msra.mxu0 0
    %1917 = vmatprep.subr.bf16.mxu0 0
    %1918 = vmatpush1.bf16.msra.mxu0 0
    %1919 = vmatprep.subr.bf16.mxu0 0
    %1920 = vmatpush1.bf16.msra.mxu0 0
    %1921 = vmatprep.subr.bf16.mxu0 0
    %1922 = vmatpush1.bf16.msra.mxu0 0
    %1923 = vmatprep.subr.bf16.mxu0 0
    %1924 = vmatpush1.bf16.msra.mxu0 0
    %1925 = vmatprep.subr.bf16.mxu0 0
    %1926 = vmatpush1.bf16.msra.mxu0 0
    %1927 = vmatprep.subr.bf16.mxu0 0
    %1928 = vmatpush1.bf16.msra.mxu0 0
    %1929 = vmatprep.subr.bf16.mxu0 0
    %1930 = vmatpush1.bf16.msra.mxu0 0
    %1931 = vmatprep.mubr.bf16.mxu0 0
    %1932 = vmatmul.mubr.bf16.gmra.mrb[0].mxu0 %v1897
    %v1933 = vpop.f32.mrb[0].mxu0
    %v1934 = vadd.f32 0.0, %v1933
    %v1935 = vpop.f32.mrb[0].mxu0
    %v1936 = vpop.f32.mrb[0].mxu0
    %v1937 = vadd.f32 0.0, %v1936
    %v1938 = vpop.f32.mrb[0].mxu0
    %1939 = vdwg.mxu0
    %v1940 = vld [vmem:[%s13] sm:$0xf]
    %v1941 = vld [vmem:[%s13 + $0x4] sm:$0xf]
    %v1942 = vld [vmem:[%s13 + $0x8] sm:$0xf]
    %v1943 = vld [vmem:[%s13 + $0xc] sm:$0xf]
    %v1944 = vld [vmem:[%s13 + $0x10] sm:$0xf]
    %v1945 = vld [vmem:[%s13 + $0x14] sm:$0xf]
    %v1946 = vld [vmem:[%s13 + $0x18] sm:$0xf]
    %v1947 = vld [vmem:[%s13 + $0x1c] sm:$0xf]
    %v1956 = vunpack.c.l.b16 %v1940
    %v1957 = vunpack.c.l.b16 %v1941
    %v1958 = vunpack.c.l.b16 %v1942
    %v1959 = vunpack.c.l.b16 %v1943
    %v1960 = vunpack.c.l.b16 %v1944
    %v1961 = vunpack.c.l.b16 %v1945
    %v1962 = vunpack.c.l.b16 %v1946
    %v1963 = vunpack.c.l.b16 %v1947
    %v1964 = vpack.c.b16 %v1957, %v1956
    %v1965 = vpack.c.b16 %v1959, %v1958
    %v1966 = vpack.c.b16 %v1961, %v1960
    %v1967 = vpack.c.b16 %v1963, %v1962
    %1972 = vmatprep.subr.bf16.mxu0 0
    %1973 = vmatpush1.bf16.msra.mxu0 %v1964
    %1974 = vmatprep.subr.bf16.mxu0 0
    %1975 = vmatpush1.bf16.msra.mxu0 %v1965
    %1976 = vmatprep.subr.bf16.mxu0 0
    %1977 = vmatpush1.bf16.msra.mxu0 %v1966
    %1978 = vmatprep.subr.bf16.mxu0 0
    %1979 = vmatpush1.bf16.msra.mxu0 %v1967
    %1980 = vmatprep.subr.bf16.mxu0 0
    %1981 = vmatpush1.bf16.msra.mxu0 0
    %1982 = vmatprep.subr.bf16.mxu0 0
    %1983 = vmatpush1.bf16.msra.mxu0 0
    %1984 = vmatprep.subr.bf16.mxu0 0
    %1985 = vmatpush1.bf16.msra.mxu0 0
    %1986 = vmatprep.subr.bf16.mxu0 0
    %1987 = vmatpush1.bf16.msra.mxu0 0
    %1988 = vmatprep.subr.bf16.mxu0 0
    %1989 = vmatpush1.bf16.msra.mxu0 0
    %1990 = vmatprep.subr.bf16.mxu0 0
    %1991 = vmatpush1.bf16.msra.mxu0 0
    %1992 = vmatprep.subr.bf16.mxu0 0
    %1993 = vmatpush1.bf16.msra.mxu0 0
    %1994 = vmatprep.subr.bf16.mxu0 0
    %1995 = vmatpush1.bf16.msra.mxu0 0
    %1996 = vmatprep.subr.bf16.mxu0 0
    %1997 = vmatpush1.bf16.msra.mxu0 0
    %1998 = vmatprep.subr.bf16.mxu0 0
    %1999 = vmatpush1.bf16.msra.mxu0 0
    %2000 = vmatprep.subr.bf16.mxu0 0
    %2001 = vmatpush1.bf16.msra.mxu0 0
    %2002 = vmatprep.subr.bf16.mxu0 0
    %2003 = vmatpush1.bf16.msra.mxu0 0
    %2004 = vmatprep.mubr.bf16.mxu0 0
    %2005 = vmatmul.mubr.bf16.gmra.mrb[0].mxu0 %v1897
    %v2006 = vpop.f32.mrb[0].mxu0
    %v2007 = vadd.f32 0.0, %v2006
    %v2008 = vpop.f32.mrb[0].mxu0
    %v2009 = vpop.f32.mrb[0].mxu0
    %v2010 = vadd.f32 0.0, %v2009
    %v2011 = vpop.f32.mrb[0].mxu0
    %2012 = vdwg.mxu0
    %v2013 = vxor.u32 %v1934, 2147483648
    %v2014 = vxor.u32 %v1937, 2147483648
    %v2015 = vmul.f32 %v2013, 1.442695
    %v2016 = vpow.pop %v2015
    %v2017 = vmul.f32 %v2014, 1.442695
    %v2018 = vpow.pop %v2017
    %v2019 = vadd.f32 %v2016, 1.0
    %v2020 = vadd.f32 %v2018, 1.0
    %v2021 = vrcp.pop %v2019
    %v2022 = vmul.f32 1.0, %v2021
    %v2023 = vrcp.pop %v2020
    %v2024 = vmul.f32 1.0, %v2023
    %v2025 = vmul.f32 %v1934, %v2022
    %v2026 = vmul.f32 %v1937, %v2024
    %v2027 = vmul.f32 %v2025, %v2007
    %v2028 = vmul.f32 %v2026, %v2010
    %v2029 = vpack.c.bf16 %v2028, %v2027
    %v2030 = vld [vmem:[%s14] sm:$0xf]
    %v2031 = vld [vmem:[%s14 + $0x4] sm:$0xf]
    %v2032 = vld [vmem:[%s14 + $0x8] sm:$0xf]
    %v2033 = vld [vmem:[%s14 + $0xc] sm:$0xf]
    %v2034 = vld [vmem:[%s14 + $0x10] sm:$0xf]
    %v2035 = vld [vmem:[%s14 + $0x14] sm:$0xf]
    %v2036 = vld [vmem:[%s14 + $0x18] sm:$0xf]
    %v2037 = vld [vmem:[%s14 + $0x1c] sm:$0xf]
    %v2038 = vld [vmem:[%s14 + $0x20] sm:$0xf]
    %v2039 = vld [vmem:[%s14 + $0x24] sm:$0xf]
    %v2040 = vld [vmem:[%s14 + $0x28] sm:$0xf]
    %v2041 = vld [vmem:[%s14 + $0x2c] sm:$0xf]
    %v2042 = vld [vmem:[%s14 + $0x30] sm:$0xf]
    %v2043 = vld [vmem:[%s14 + $0x34] sm:$0xf]
    %v2044 = vld [vmem:[%s14 + $0x38] sm:$0xf]
    %v2045 = vld [vmem:[%s14 + $0x3c] sm:$0xf]
    %v2062 = vunpack.c.l.b16 %v2030
    %v2063 = vunpack.c.l.b16 %v2031
    %v2064 = vunpack.c.l.b16 %v2032
    %v2065 = vunpack.c.l.b16 %v2033
    %v2066 = vunpack.c.l.b16 %v2034
    %v2067 = vunpack.c.l.b16 %v2035
    %v2068 = vunpack.c.l.b16 %v2036
    %v2069 = vunpack.c.l.b16 %v2037
    %v2070 = vunpack.c.l.b16 %v2038
    %v2071 = vunpack.c.l.b16 %v2039
    %v2072 = vunpack.c.l.b16 %v2040
    %v2073 = vunpack.c.l.b16 %v2041
    %v2074 = vunpack.c.l.b16 %v2042
    %v2075 = vunpack.c.l.b16 %v2043
    %v2076 = vunpack.c.l.b16 %v2044
    %v2077 = vunpack.c.l.b16 %v2045
    %v2078 = vpack.c.b16 %v2063, %v2062
    %v2079 = vpack.c.b16 %v2065, %v2064
    %v2080 = vpack.c.b16 %v2067, %v2066
    %v2081 = vpack.c.b16 %v2069, %v2068
    %v2082 = vpack.c.b16 %v2071, %v2070
    %v2083 = vpack.c.b16 %v2073, %v2072
    %v2084 = vpack.c.b16 %v2075, %v2074
    %v2085 = vpack.c.b16 %v2077, %v2076
    %2094 = vmatprep.subr.bf16.mxu0 0
    %2095 = vmatpush1.bf16.msra.mxu0 %v2078
    %2096 = vmatprep.subr.bf16.mxu0 0
    %2097 = vmatpush1.bf16.msra.mxu0 %v2079
    %2098 = vmatprep.subr.bf16.mxu0 0
    %2099 = vmatpush1.bf16.msra.mxu0 %v2080
    %2100 = vmatprep.subr.bf16.mxu0 0
    %2101 = vmatpush1.bf16.msra.mxu0 %v2081
    %2102 = vmatprep.subr.bf16.mxu0 0
    %2103 = vmatpush1.bf16.msra.mxu0 %v2082
    %2104 = vmatprep.subr.bf16.mxu0 0
    %2105 = vmatpush1.bf16.msra.mxu0 %v2083
    %2106 = vmatprep.subr.bf16.mxu0 0
    %2107 = vmatpush1.bf16.msra.mxu0 %v2084
    %2108 = vmatprep.subr.bf16.mxu0 0
    %2109 = vmatpush1.bf16.msra.mxu0 %v2085
    %2110 = vmatprep.subr.bf16.mxu0 0
    %2111 = vmatpush1.bf16.msra.mxu0 0
    %2112 = vmatprep.subr.bf16.mxu0 0
    %2113 = vmatpush1.bf16.msra.mxu0 0
    %2114 = vmatprep.subr.bf16.mxu0 0
    %2115 = vmatpush1.bf16.msra.mxu0 0
    %2116 = vmatprep.subr.bf16.mxu0 0
    %2117 = vmatpush1.bf16.msra.mxu0 0
    %2118 = vmatprep.subr.bf16.mxu0 0
    %2119 = vmatpush1.bf16.msra.mxu0 0
    %2120 = vmatprep.subr.bf16.mxu0 0
    %2121 = vmatpush1.bf16.msra.mxu0 0
    %2122 = vmatprep.subr.bf16.mxu0 0
    %2123 = vmatpush1.bf16.msra.mxu0 0
    %2124 = vmatprep.subr.bf16.mxu0 0
    %2125 = vmatpush1.bf16.msra.mxu0 0
    %2126 = vmatprep.mubr.bf16.mxu0 0
    %2127 = vmatmul.mubr.bf16.gmra.mrb[0].mxu0 %v2029
    %v2128 = vpop.f32.mrb[0].mxu0
    %v2129 = vadd.f32 0.0, %v2128
    %v2130 = vpop.f32.mrb[0].mxu0
    %v2131 = vpop.f32.mrb[0].mxu0
    %v2132 = vadd.f32 0.0, %v2131
    %v2133 = vpop.f32.mrb[0].mxu0
    %2134 = vdwg.mxu0
    %v2135 = vadd.f32 %v1836, %v2129
    %v2136 = vadd.f32 %v1837, %v2132
    %2137 = vst.msk [vmem:[#allocation2] sm:$0xff] %vm56, %v2135
    %2138 = vst.msk [vmem:[#allocation2 + $0x8] sm:$0xff] %vm56, %v2136
    // Predicated region
    $region62: #{tpu_custom_call.1} parent=1 // pred_check
      _
    $region63: #{tpu_custom_call.1} parent=1 // pred_check_branch
      %2140 = sbr.rel (0) target = $region65
    $region64: #{tpu_custom_call.1} parent=1 // pred_region
      %s2142 = ssub.s32 256, 256
      %2143 = vsyncadd [#allocation3], %s2142
      %s2144 = sshll.u32 [#allocation2], 4
      %s2145 = int_to_ptr.vmem [resolvable:$true] %s2144
      %2150 = dma.vmem_to_hbm [thread:$0]  %s2145, 256, %s15, [#allocation3], 128, 128, 8
    $region65: #{tpu_custom_call.1} parent=1 // pred_fallthru
      _
    // Predicated region
    $region66: #{tpu_custom_call.1} parent=1 // pred_check
      _
    $region67: #{tpu_custom_call.1} parent=1 // pred_check_branch
      %2152 = sbr.rel (0) target = $region69
    $region68: #{tpu_custom_call.1} parent=1 // pred_region
      %2153 = dma.done [#allocation3], 256
    $region69: #{tpu_custom_call.1} parent=1 // pred_fallthru
      _
    %2154 = vsyncpa [#allocation3], 1

</llo_original>
